<compile_context>
chip_gen: v5e
topology: v5e:2x2
jax: 0.10.0
libtpu: 0.0.40
codegen_flags: <defaults>
</compile_context>

<pallas_src>
import math

import jax
import jax.numpy as jnp
from jax.experimental import pallas as pl
from jax.experimental.pallas import tpu as pltpu


_BN_EPS = 1e-5


# ----------------------------------------------------------------------------
# Fused Pallas kernel
# ----------------------------------------------------------------------------

def _bn_relu(y, gamma, beta):
    """Training-mode BatchNorm (stats over rows, per-column channels) + ReLU,
    as a single FMA normalization pass."""
    m = jnp.mean(y, axis=0, keepdims=True)
    v = jnp.maximum(jnp.mean(y * y, axis=0, keepdims=True) - m * m, 0.0)
    scale = gamma * jax.lax.rsqrt(v + _BN_EPS)
    shift = beta - m * scale
    return jnp.maximum(y * scale + shift, 0.0)


def _make_fused_kernel(n_extra):
    n_in = 5 + 2 * n_extra + 3

    def kernel(*refs):
        cols_ref, w0_ref, w1_ref, corr_ref, gb_ref = refs[:5]
        extra = refs[5:5 + 2 * n_extra]
        erep_ref, tsel_ref, eps_ref = refs[5 + 2 * n_extra:n_in]
        z_ref, mu_ref, sg_ref = refs[n_in:]

        gb = gb_ref[...]                                      # (2, sum_l C_l) f32

        # ---- block 1: Conv1x1(+bias, folded)+ReLU fused with Conv3x3 --------
        a0 = jnp.maximum(
            jnp.dot(cols_ref[...], w0_ref[...],
                    preferred_element_type=jnp.float32), 0.0)          # (M1, 9*C0)
        # conv1 bias dropped (training-mode BN cancels it exactly); corr removes
        # the spurious relu(b0) contribution of zero-padded taps.
        y = jnp.dot(a0.astype(jnp.bfloat16), w1_ref[...],
                    preferred_element_type=jnp.float32) + corr_ref[...]  # (M1, C1)
        c_off = 0
        c_out = y.shape[1]
        a = _bn_relu(y, gb[0:1, c_off:c_off + c_out], gb[1:2, c_off:c_off + c_out])
        c_off += c_out

        # ---- blocks 2..D: 2 matmuls per block (gather + tap-concat weights) --
        for blk in range(n_extra):
            s_ref, w_ref = extra[2 * blk], extra[2 * blk + 1]
            mo = s_ref.shape[0] // 9
            c_out = w_ref.shape[1] // 9
            g = jnp.dot(s_ref[...], a.astype(jnp.bfloat16),
                        preferred_element_type=jnp.float32)             # (9*Mo, Cin)
            p = jnp.dot(g.astype(jnp.bfloat16), w_ref[...],
                        preferred_element_type=jnp.float32)             # (9*Mo, 9*Cout)
            # conv = sum of the 9 diagonal (Mo, Cout) blocks (tap t with weight t).
            y = p[0:mo, 0:c_out]
            for t in range(1, 9):
                y = y + p[t * mo:(t + 1) * mo, t * c_out:(t + 1) * c_out]
            a = _bn_relu(y, gb[0:1, c_off:c_off + c_out],
                         gb[1:2, c_off:c_off + c_out])                  # (Mo, Cout)
            c_off += c_out

        # ---- chunk (NCHW-flatten halves == channel halves) + reparameterize --
        c_half = a.shape[1] // 2
        mu = a[:, :c_half]
        sigma = jnp.exp(a[:, c_half:])
        z = mu + eps_ref[...] * sigma                                    # (Mo, c_half)

        # ---- lane-dense latent relayout: (Mo, c_half) -> (N, c_half*H*W) -----
        # out[n, c*S+s] = X[n*S+s, c]; done with exact 0/1 matmuls + iota mask.
        stacked = jnp.concatenate([z, mu, sigma], axis=0)                # (3*Mo, c_half)
        wide = jnp.dot(stacked, erep_ref[...],
                       preferred_element_type=jnp.float32)               # (3*Mo, c_half*S)
        s_sp = erep_ref.shape[1] // c_half
        r_id = jax.lax.broadcasted_iota(jnp.int32, wide.shape, 0)
        c_id = jax.lax.broadcasted_iota(jnp.int32, wide.shape, 1)
        sel = jnp.where((c_id % s_sp) == (r_id % s_sp), wide, 0.0)
        mo = stacked.shape[0] // 3
        tsel = tsel_ref[...]                                             # (N, Mo)
        z_ref[...] = jnp.dot(tsel, sel[0:mo, :], preferred_element_type=jnp.float32)
        mu_ref[...] = jnp.dot(tsel, sel[mo:2 * mo, :], preferred_element_type=jnp.float32)
        sg_ref[...] = jnp.dot(tsel, sel[2 * mo:3 * mo, :], preferred_element_type=jnp.float32)

    return kernel


# ----------------------------------------------------------------------------
# Wrapper-side constant / layout preparation (pure XLA, raw inputs only)
# ----------------------------------------------------------------------------

def _conv_out(n):
    return (n - 1) // 2 + 1          # k=3, stride=2, pad=1


def _im2col_input(x_nhwc):
    """im2col (k=3, s=2, p=1) of the raw input, (tap, ci)-ordered columns, plus
    a per-tap validity mask."""
    N, H, W, C = x_nhwc.shape
    Ho, Wo = _conv_out(H), _conv_out(W)
    xp = jnp.pad(x_nhwc, ((0, 0), (1, 1), (1, 1), (0, 0)))
    vp = jnp.pad(jnp.ones((N, H, W, 1), jnp.float32),
                 ((0, 0), (1, 1), (1, 1), (0, 0)))
    cols, valid = [], []
    for kh in range(3):
        for kw in range(3):
            cols.append(xp[:, kh:kh + 2 * Ho:2, kw:kw + 2 * Wo:2, :])
            valid.append(vp[:, kh:kh + 2 * Ho:2, kw:kw + 2 * Wo:2, :])
    cols = jnp.stack(cols, axis=3).reshape(N * Ho * Wo, 9 * C)      # (M, 9*Cin)
    valid = jnp.concatenate(valid, axis=3).reshape(N * Ho * Wo, 9)  # (M, 9)
    return cols, valid, (Ho, Wo)


def _tap_select(N, Hi, Wi):
    """(9*Mo, Mi) 0/1 selection matrix, tap-major rows: row t*Mo + mo selects the
    input position feeding tap t of output position mo (zero row if padded)."""
    Ho, Wo = _conv_out(Hi), _conv_out(Wi)
    m_in = N * Hi * Wi
    n = jnp.arange(N)[:, None, None]
    i = jnp.arange(Ho)[None, :, None]
    j = jnp.arange(Wo)[None, None, :]
    blocks = []
    for kh in range(3):
        for kw in range(3):
            yy = 2 * i + kh - 1
            xx = 2 * j + kw - 1
            ok = jnp.broadcast_to((yy >= 0) & (yy < Hi) & (xx >= 0) & (xx < Wi),
                                  (N, Ho, Wo)).reshape(-1)
            src = n * (Hi * Wi) + jnp.clip(yy, 0, Hi - 1) * Wi + jnp.clip(xx, 0, Wi - 1)
            src = jnp.broadcast_to(src, (N, Ho, Wo)).reshape(-1)
            g = jax.nn.one_hot(src, m_in, dtype=jnp.float32) * ok[:, None].astype(jnp.float32)
            blocks.append(g)
    return jnp.concatenate(blocks, axis=0), (Ho, Wo)


def _tile_bytes(shape, dtype):
    """Rough VMEM footprint of an array, (8*packing, 128)-tile padded."""
    item = jnp.dtype(dtype).itemsize
    rows = int(math.prod(shape[:-1])) if len(shape) > 1 else 1
    cols = int(shape[-1])
    sub = 8 * max(1, 4 // item)
    return (-(-rows // sub) * sub) * (-(-cols // 128) * 128) * item


def init_encoder_params(key, start_channels=8, downsamplings=2, input_channels=3):
    k = key
    k, s = jax.random.split(k)
    conv0_w = 0.1 * jax.random.normal(s, (start_channels, input_channels, 1, 1), jnp.float32)
    k, s = jax.random.split(k)
    conv0_b = 0.1 * jax.random.normal(s, (start_channels,), jnp.float32)
    ds = []
    for i in range(downsamplings):
        cin = start_channels * 2 ** i
        cout = start_channels * 2 ** (i + 1)
        k, s1 = jax.random.split(k)
        k, s2 = jax.random.split(k)
        w = 0.1 * jax.random.normal(s1, (cout, cin, 3, 3), jnp.float32)   # OIHW
        b = 0.1 * jax.random.normal(s2, (cout,), jnp.float32)
        gamma = jnp.ones((cout,), jnp.float32)       # BatchNorm2d default init
        beta = jnp.zeros((cout,), jnp.float32)
        ds.append((w, b, gamma, beta))
    return {"conv0_w": conv0_w, "conv0_b": conv0_b, "ds": ds}


def encoder_forward(params, x_nchw, noise_key):
    N = x_nchw.shape[0]
    x = jnp.transpose(x_nchw, (0, 2, 3, 1)).astype(jnp.float32)     # NCHW -> NHWC
    conv0_w, conv0_b = params["conv0_w"], params["conv0_b"]
    C0 = conv0_w.shape[0]
    D = len(params["ds"])

    # ---- block-1 operands: conv0 folded into the first 3x3-conv matmul ------
    cols, valid, (H1, W1) = _im2col_input(x)                        # (M1, 9*Cin), (M1, 9)
    M1 = cols.shape[0]
    w0mat = conv0_w[:, :, 0, 0].T                                    # (Cin, C0)
    w0_aug = jnp.concatenate(
        [jnp.kron(jnp.eye(9, dtype=jnp.float32), w0mat),
         jnp.tile(conv0_b, 9).reshape(1, 9 * C0)], axis=0)           # bias folded
    cols_aug = jnp.concatenate([cols, jnp.ones((M1, 1), jnp.float32)], axis=1)

    w1, _b1, g1, bt1 = params["ds"][0]                               # conv bias b1 dropped (BN cancels)
    C1 = w1.shape[0]
    w1_rs = jnp.transpose(w1, (2, 3, 1, 0)).reshape(9 * C0, C1)      # rows (tap, c0)

    # Exact padding correction (replaces the old (9*C0, M1) mask operand):
    # padded taps would contribute relu(b0) through conv1; subtract it, using
    # the same bf16-rounded operands the MXU sees.
    b0_q = jnp.maximum(conv0_b.astype(jnp.bfloat16).astype(jnp.float32), 0.0)
    w1_q = w1_rs.astype(jnp.bfloat16).astype(jnp.float32).reshape(9, C0, C1)
    k_tap = jnp.einsum("c,tcd->td", b0_q, w1_q)                      # (9, C1)
    corr = -(1.0 - valid) @ k_tap                                    # (M1, C1)

    gb_list = [jnp.stack([g1, bt1], axis=0)]
    extra_args = []
    inter_shapes = [(M1, 9 * C0), (M1, C1)]
    Hc, Wc, Cc = H1, W1, C1
    for li in range(1, D):
        w, _b, g, bt = params["ds"][li]                              # conv bias dropped (BN cancels)
        cout = w.shape[0]
        s_sel, (Ho, Wo) = _tap_select(N, Hc, Wc)                     # (9*Mo, Mc)
        w_cat = jnp.transpose(w, (1, 2, 3, 0)).reshape(Cc, 9 * cout)  # (Cin, 9*Cout)
        extra_args += [s_sel.astype(jnp.bfloat16), w_cat.astype(jnp.bfloat16)]
        gb_list.append(jnp.stack([g, bt], axis=0))
        inter_shapes.append((9 * N * Ho * Wo, 9 * cout))
        Hc, Wc, Cc = Ho, Wo, cout
    gb_all = jnp.concatenate(gb_list, axis=1)                        # (2, sum C_l)

    Mo = N * Hc * Wc
    s_sp = Hc * Wc
    c_half = Cc // 2
    lat = c_half * s_sp

    # Latent-relayout constants (kernel emits torch-layout (N, c_half*H*W)).
    erep = jnp.kron(jnp.eye(c_half, dtype=jnp.float32),
                    jnp.ones((1, s_sp), jnp.float32))                # (c_half, lat)
    t_small = jnp.kron(jnp.eye(N, dtype=jnp.float32),
                       jnp.ones((1, s_sp), jnp.float32))             # (N, Mo)

    # TODO(synk): torch.randn_like noise is drawn with jax.random in the wrapper
    # for bit-exact, key-reproducible draws; an in-kernel pltpu.prng_* draw
    # would remove this operand at the cost of a different RNG stream.
    eps = jax.random.normal(noise_key, (Mo, c_half), jnp.float32)

    args = [cols_aug.astype(jnp.bfloat16), w0_aug.astype(jnp.bfloat16),
            w1_rs.astype(jnp.bfloat16), corr, gb_all] + extra_args + [erep, t_small, eps]
    out_shape = tuple(jax.ShapeDtypeStruct((N, lat), jnp.float32) for _ in range(3))

    # VMEM budget: inputs + outputs + f32 intermediates, (8,128)-padded.
    inter_shapes += [(3 * Mo, lat), (3 * Mo, c_half)]
    vmem_bytes = sum(_tile_bytes(a.shape, a.dtype) for a in args)
    vmem_bytes += sum(_tile_bytes(o.shape, o.dtype) for o in out_shape)
    vmem_bytes += sum(_tile_bytes(s, jnp.float32) for s in inter_shapes)
    assert vmem_bytes < 20 * 1024 * 1024, (
        "fused single-block kernel assumes VMEM-resident operands/intermediates "
        "(tightest target v7x: 64 MiB total / 32 MiB scoped); "
        f"estimated ~{vmem_bytes / 2**20:.1f} MiB.  Larger configs need an "
        "output-tiled grid with a two-pass BatchNorm.")

    vspec = pl.BlockSpec(memory_space=pltpu.MemorySpace.VMEM)
    z, mu, sigma = pl.pallas_call(
        _make_fused_kernel(D - 1),
        out_shape=out_shape,
        in_specs=[vspec] * len(args),
        out_specs=(vspec, vspec, vspec),
        compiler_params=pltpu.CompilerParams(vmem_limit_bytes=32 * 1024 * 1024),
    )(*args)
    return z, (mu, sigma)


# ----------------------------------------------------------------------------
# Pure-JAX f32 reference (mirrors the effective PyTorch forward)
# ----------------------------------------------------------------------------

def encoder_reference(params, x_nchw, eps_mc):
    x = x_nchw.astype(jnp.float32)
    dn = ("NCHW", "OIHW", "NCHW")
    h = jax.lax.conv_general_dilated(x, params["conv0_w"], (1, 1), "VALID",
                                     dimension_numbers=dn)
    h = jnp.maximum(h + params["conv0_b"][None, :, None, None], 0.0)
    for (w, b, g, bt) in params["ds"]:
        h = jax.lax.conv_general_dilated(h, w, (2, 2), ((1, 1), (1, 1)),
                                         dimension_numbers=dn)
        h = h + b[None, :, None, None]
        m = jnp.mean(h, axis=(0, 2, 3), keepdims=True)
        v = jnp.mean((h - m) ** 2, axis=(0, 2, 3), keepdims=True)
        h = (h - m) * jax.lax.rsqrt(v + _BN_EPS) * g[None, :, None, None] \
            + bt[None, :, None, None]
        h = jnp.maximum(h, 0.0)
    N, C, Hh, Ww = h.shape
    flat = h.reshape(N, -1)
    mu, log_sigma = jnp.split(flat, 2, axis=-1)
    sigma = jnp.exp(log_sigma)                         # reference uses exp(x), not exp(0.5x)
    c_half, s_sp = C // 2, Hh * Ww
    eps_lat = jnp.transpose(eps_mc.reshape(N, s_sp, c_half), (0, 2, 1)).reshape(N, c_half * s_sp)
    z = mu + eps_lat * sigma
    return z, mu, sigma


if __name__ == "__main__":
    key = jax.random.PRNGKey(0)
    pkey, xkey, nkey = jax.random.split(key, 3)

    # Small config: img_size=16, start_channels=8, downsamplings=2, input_channels=3
    start_channels, downsamplings, input_channels = 8, 2, 3
    params = init_encoder_params(pkey, start_channels, downsamplings, input_channels)
    x = jax.random.normal(xkey, (2, input_channels, 16, 16), jnp.float32)   # NCHW

    fwd = jax.jit(encoder_forward)
    z, (mu, sigma) = fwd(params, x, nkey)
    jax.block_until_ready((z, mu, sigma))

    # flattened dim = start_channels * img^2 / 2^D = 512 -> halves of 256
    assert z.shape == (2, 256) and mu.shape == (2, 256) and sigma.shape == (2, 256)
    assert bool(jnp.all(jnp.isfinite(z))) and bool(jnp.all(sigma > 0.0))

    # f32 reference check (kernel uses bf16 MXU operands -> loose tolerances).
    hd = 16 // 2 ** downsamplings
    c_half = start_channels * 2 ** downsamplings // 2
    eps_mc = jax.random.normal(nkey, (2 * hd * hd, c_half), jnp.float32)
    z_r, mu_r, sg_r = encoder_reference(params, x, eps_mc)

    def rel(a, b):
        return float(jnp.max(jnp.abs(a - b) / (1.0 + jnp.abs(b))))

    assert rel(mu, mu_r) < 0.25, rel(mu, mu_r)
    assert rel(sigma, sg_r) < 0.35, rel(sigma, sg_r)
    assert rel(z, z_r) < 0.35, rel(z, z_r)
    print("KERNEL_OK")
</pallas_src>

<mosaic_0001>
module attributes {stable_mosaic.version = 11 : i64} {
  func.func @kernel(%arg0: memref<128x28xbf16, #tpu.memory_space<vmem>>, %arg1: memref<28x72xbf16, #tpu.memory_space<vmem>>, %arg2: memref<72x16xbf16, #tpu.memory_space<vmem>>, %arg3: memref<128x16xf32, #tpu.memory_space<vmem>>, %arg4: memref<2x48xf32, #tpu.memory_space<vmem>>, %arg5: memref<288x128xbf16, #tpu.memory_space<vmem>>, %arg6: memref<16x288xbf16, #tpu.memory_space<vmem>>, %arg7: memref<16x256xf32, #tpu.memory_space<vmem>>, %arg8: memref<2x32xf32, #tpu.memory_space<vmem>>, %arg9: memref<32x16xf32, #tpu.memory_space<vmem>>, %arg10: memref<2x256xf32, #tpu.memory_space<vmem>>, %arg11: memref<2x256xf32, #tpu.memory_space<vmem>>, %arg12: memref<2x256xf32, #tpu.memory_space<vmem>>) attributes {dimension_semantics = [], scalar_prefetch = 0 : i64, scratch_operands = 0 : i64, tpu.core_type = #tpu.core_type<tc>} {
    %c0 = arith.constant 0 : index
    %c0_0 = arith.constant 0 : index
    %0 = vector.load %arg4[%c0, %c0_0] : memref<2x48xf32, #tpu.memory_space<vmem>>, vector<2x48xf32>
    %c0_1 = arith.constant 0 : index
    %c0_2 = arith.constant 0 : index
    %1 = vector.load %arg0[%c0_1, %c0_2] : memref<128x28xbf16, #tpu.memory_space<vmem>>, vector<128x28xbf16>
    %c0_3 = arith.constant 0 : index
    %c0_4 = arith.constant 0 : index
    %2 = vector.load %arg1[%c0_3, %c0_4] : memref<28x72xbf16, #tpu.memory_space<vmem>>, vector<28x72xbf16>
    %cst = arith.constant dense<0.000000e+00> : vector<128x72xf32>
    %3 = tpu.matmul %1, %2, %cst {dimension_numbers = #tpu.dot_dimension_numbers<[1], [0], [0], [1], [0, 0, 1, 1], [], []>} : vector<128x28xbf16>, vector<28x72xbf16>, vector<128x72xf32> -> vector<128x72xf32>
    %cst_5 = arith.constant 0.000000e+00 : f32
    %4 = vector.broadcast %cst_5 : f32 to vector<128x72xf32>
    %5 = arith.maximumf %3, %4 : vector<128x72xf32>
    %6 = arith.truncf %5 : vector<128x72xf32> to vector<128x72xbf16>
    %c0_6 = arith.constant 0 : index
    %c0_7 = arith.constant 0 : index
    %7 = vector.load %arg2[%c0_6, %c0_7] : memref<72x16xbf16, #tpu.memory_space<vmem>>, vector<72x16xbf16>
    %cst_8 = arith.constant dense<0.000000e+00> : vector<128x16xf32>
    %8 = tpu.matmul %6, %7, %cst_8 {dimension_numbers = #tpu.dot_dimension_numbers<[1], [0], [0], [1], [0, 0, 1, 1], [], []>} : vector<128x72xbf16>, vector<72x16xbf16>, vector<128x16xf32> -> vector<128x16xf32>
    %c0_9 = arith.constant 0 : index
    %c0_10 = arith.constant 0 : index
    %9 = vector.load %arg3[%c0_9, %c0_10] : memref<128x16xf32, #tpu.memory_space<vmem>>, vector<128x16xf32>
    %10 = arith.addf %8, %9 : vector<128x16xf32>
    %11 = vector.extract_strided_slice %0 {offsets = [0, 0], sizes = [1, 16], strides = [1, 1]} : vector<2x48xf32> to vector<1x16xf32>
    %12 = vector.extract_strided_slice %0 {offsets = [1, 0], sizes = [1, 16], strides = [1, 1]} : vector<2x48xf32> to vector<1x16xf32>
    %cst_11 = arith.constant dense<0.000000e+00> : vector<16xf32>
    %13 = vector.multi_reduction <add>, %10, %cst_11 [0] : vector<128x16xf32> to vector<16xf32>
    %14 = vector.shape_cast %13 : vector<16xf32> to vector<1x16xf32>
    %cst_12 = arith.constant 1.280000e+02 : f32
    %15 = vector.broadcast %cst_12 : f32 to vector<1x16xf32>
    %16 = arith.divf %14, %15 : vector<1x16xf32>
    %17 = arith.mulf %10, %10 : vector<128x16xf32>
    %cst_13 = arith.constant dense<0.000000e+00> : vector<16xf32>
    %18 = vector.multi_reduction <add>, %17, %cst_13 [0] : vector<128x16xf32> to vector<16xf32>
    %19 = vector.shape_cast %18 : vector<16xf32> to vector<1x16xf32>
    %cst_14 = arith.constant 1.280000e+02 : f32
    %20 = vector.broadcast %cst_14 : f32 to vector<1x16xf32>
    %21 = arith.divf %19, %20 : vector<1x16xf32>
    %22 = arith.mulf %16, %16 : vector<1x16xf32>
    %23 = arith.subf %21, %22 : vector<1x16xf32>
    %cst_15 = arith.constant 0.000000e+00 : f32
    %24 = vector.broadcast %cst_15 : f32 to vector<1x16xf32>
    %25 = arith.maximumf %23, %24 : vector<1x16xf32>
    %cst_16 = arith.constant 9.99999974E-6 : f32
    %26 = vector.broadcast %cst_16 : f32 to vector<1x16xf32>
    %27 = arith.addf %25, %26 : vector<1x16xf32>
    %28 = math.rsqrt %27 : vector<1x16xf32>
    %29 = arith.mulf %11, %28 : vector<1x16xf32>
    %30 = arith.mulf %16, %29 : vector<1x16xf32>
    %31 = arith.subf %12, %30 : vector<1x16xf32>
    %32 = vector.broadcast %29 : vector<1x16xf32> to vector<128x16xf32>
    %33 = arith.mulf %10, %32 : vector<128x16xf32>
    %34 = vector.broadcast %31 : vector<1x16xf32> to vector<128x16xf32>
    %35 = arith.addf %33, %34 : vector<128x16xf32>
    %cst_17 = arith.constant 0.000000e+00 : f32
    %36 = vector.broadcast %cst_17 : f32 to vector<128x16xf32>
    %37 = arith.maximumf %35, %36 : vector<128x16xf32>
    %c0_18 = arith.constant 0 : index
    %c0_19 = arith.constant 0 : index
    %38 = vector.load %arg5[%c0_18, %c0_19] : memref<288x128xbf16, #tpu.memory_space<vmem>>, vector<288x128xbf16>
    %39 = arith.truncf %37 : vector<128x16xf32> to vector<128x16xbf16>
    %cst_20 = arith.constant dense<0.000000e+00> : vector<288x16xf32>
    %40 = tpu.matmul %38, %39, %cst_20 {dimension_numbers = #tpu.dot_dimension_numbers<[1], [0], [0], [1], [0, 0, 1, 1], [], []>} : vector<288x128xbf16>, vector<128x16xbf16>, vector<288x16xf32> -> vector<288x16xf32>
    %41 = arith.truncf %40 : vector<288x16xf32> to vector<288x16xbf16>
    %c0_21 = arith.constant 0 : index
    %c0_22 = arith.constant 0 : index
    %42 = vector.load %arg6[%c0_21, %c0_22] : memref<16x288xbf16, #tpu.memory_space<vmem>>, vector<16x288xbf16>
    %cst_23 = arith.constant dense<0.000000e+00> : vector<288x288xf32>
    %43 = tpu.matmul %41, %42, %cst_23 {dimension_numbers = #tpu.dot_dimension_numbers<[1], [0], [0], [1], [0, 0, 1, 1], [], []>} : vector<288x16xbf16>, vector<16x288xbf16>, vector<288x288xf32> -> vector<288x288xf32>
    %44 = vector.extract_strided_slice %43 {offsets = [0, 0], sizes = [32, 32], strides = [1, 1]} : vector<288x288xf32> to vector<32x32xf32>
    %45 = vector.extract_strided_slice %43 {offsets = [32, 32], sizes = [32, 32], strides = [1, 1]} : vector<288x288xf32> to vector<32x32xf32>
    %46 = arith.addf %44, %45 : vector<32x32xf32>
    %47 = vector.extract_strided_slice %43 {offsets = [64, 64], sizes = [32, 32], strides = [1, 1]} : vector<288x288xf32> to vector<32x32xf32>
    %48 = arith.addf %46, %47 : vector<32x32xf32>
    %49 = vector.extract_strided_slice %43 {offsets = [96, 96], sizes = [32, 32], strides = [1, 1]} : vector<288x288xf32> to vector<32x32xf32>
    %50 = arith.addf %48, %49 : vector<32x32xf32>
    %51 = vector.extract_strided_slice %43 {offsets = [128, 128], sizes = [32, 32], strides = [1, 1]} : vector<288x288xf32> to vector<32x32xf32>
    %52 = arith.addf %50, %51 : vector<32x32xf32>
    %53 = vector.extract_strided_slice %43 {offsets = [160, 160], sizes = [32, 32], strides = [1, 1]} : vector<288x288xf32> to vector<32x32xf32>
    %54 = arith.addf %52, %53 : vector<32x32xf32>
    %55 = vector.extract_strided_slice %43 {offsets = [192, 192], sizes = [32, 32], strides = [1, 1]} : vector<288x288xf32> to vector<32x32xf32>
    %56 = arith.addf %54, %55 : vector<32x32xf32>
    %57 = vector.extract_strided_slice %43 {offsets = [224, 224], sizes = [32, 32], strides = [1, 1]} : vector<288x288xf32> to vector<32x32xf32>
    %58 = arith.addf %56, %57 : vector<32x32xf32>
    %59 = vector.extract_strided_slice %43 {offsets = [256, 256], sizes = [32, 32], strides = [1, 1]} : vector<288x288xf32> to vector<32x32xf32>
    %60 = arith.addf %58, %59 : vector<32x32xf32>
    %61 = vector.extract_strided_slice %0 {offsets = [0, 16], sizes = [1, 32], strides = [1, 1]} : vector<2x48xf32> to vector<1x32xf32>
    %62 = vector.extract_strided_slice %0 {offsets = [1, 16], sizes = [1, 32], strides = [1, 1]} : vector<2x48xf32> to vector<1x32xf32>
    %cst_24 = arith.constant dense<0.000000e+00> : vector<32xf32>
    %63 = vector.multi_reduction <add>, %60, %cst_24 [0] : vector<32x32xf32> to vector<32xf32>
    %64 = vector.shape_cast %63 : vector<32xf32> to vector<1x32xf32>
    %cst_25 = arith.constant 3.200000e+01 : f32
    %65 = vector.broadcast %cst_25 : f32 to vector<1x32xf32>
    %66 = arith.divf %64, %65 : vector<1x32xf32>
    %67 = arith.mulf %60, %60 : vector<32x32xf32>
    %cst_26 = arith.constant dense<0.000000e+00> : vector<32xf32>
    %68 = vector.multi_reduction <add>, %67, %cst_26 [0] : vector<32x32xf32> to vector<32xf32>
    %69 = vector.shape_cast %68 : vector<32xf32> to vector<1x32xf32>
    %cst_27 = arith.constant 3.200000e+01 : f32
    %70 = vector.broadcast %cst_27 : f32 to vector<1x32xf32>
    %71 = arith.divf %69, %70 : vector<1x32xf32>
    %72 = arith.mulf %66, %66 : vector<1x32xf32>
    %73 = arith.subf %71, %72 : vector<1x32xf32>
    %cst_28 = arith.constant 0.000000e+00 : f32
    %74 = vector.broadcast %cst_28 : f32 to vector<1x32xf32>
    %75 = arith.maximumf %73, %74 : vector<1x32xf32>
    %cst_29 = arith.constant 9.99999974E-6 : f32
    %76 = vector.broadcast %cst_29 : f32 to vector<1x32xf32>
    %77 = arith.addf %75, %76 : vector<1x32xf32>
    %78 = math.rsqrt %77 : vector<1x32xf32>
    %79 = arith.mulf %61, %78 : vector<1x32xf32>
    %80 = arith.mulf %66, %79 : vector<1x32xf32>
    %81 = arith.subf %62, %80 : vector<1x32xf32>
    %82 = vector.broadcast %79 : vector<1x32xf32> to vector<32x32xf32>
    %83 = arith.mulf %60, %82 : vector<32x32xf32>
    %84 = vector.broadcast %81 : vector<1x32xf32> to vector<32x32xf32>
    %85 = arith.addf %83, %84 : vector<32x32xf32>
    %cst_30 = arith.constant 0.000000e+00 : f32
    %86 = vector.broadcast %cst_30 : f32 to vector<32x32xf32>
    %87 = arith.maximumf %85, %86 : vector<32x32xf32>
    %88 = vector.extract_strided_slice %87 {offsets = [0, 0], sizes = [32, 16], strides = [1, 1]} : vector<32x32xf32> to vector<32x16xf32>
    %89 = vector.extract_strided_slice %87 {offsets = [0, 16], sizes = [32, 16], strides = [1, 1]} : vector<32x32xf32> to vector<32x16xf32>
    %90 = math.exp %89 : vector<32x16xf32>
    %c0_31 = arith.constant 0 : index
    %c0_32 = arith.constant 0 : index
    %91 = vector.load %arg9[%c0_31, %c0_32] : memref<32x16xf32, #tpu.memory_space<vmem>>, vector<32x16xf32>
    %92 = arith.mulf %91, %90 : vector<32x16xf32>
    %93 = arith.addf %88, %92 : vector<32x16xf32>
    %94 = tpu.concatenate %93, %88, %90 in 0 : vector<32x16xf32>, vector<32x16xf32>, vector<32x16xf32> -> vector<96x16xf32>
    %c0_33 = arith.constant 0 : index
    %c0_34 = arith.constant 0 : index
    %95 = vector.load %arg7[%c0_33, %c0_34] : memref<16x256xf32, #tpu.memory_space<vmem>>, vector<16x256xf32>
    %cst_35 = arith.constant dense<0.000000e+00> : vector<96x256xf32>
    %96 = tpu.matmul %94, %95, %cst_35 {dimension_numbers = #tpu.dot_dimension_numbers<[1], [0], [0], [1], [0, 0, 1, 1], [], []>} : vector<96x16xf32>, vector<16x256xf32>, vector<96x256xf32> -> vector<96x256xf32>
    %97 = tpu.iota {dimensions = array<i32: 0>} : vector<96x256xi32>
    %98 = tpu.iota {dimensions = array<i32: 1>} : vector<96x256xi32>
    %c16_i32 = arith.constant 16 : i32
    %c0_i32 = arith.constant 0 : i32
    %99 = arith.cmpi eq, %c16_i32, %c0_i32 : i32
    %c1_i32 = arith.constant 1 : i32
    %100 = arith.select %99, %c1_i32, %c16_i32 : i32
    %101 = vector.broadcast %100 : i32 to vector<96x256xi32>
    %102 = arith.remsi %98, %101 : vector<96x256xi32>
    %c0_i32_36 = arith.constant 0 : i32
    %103 = vector.broadcast %c0_i32_36 : i32 to vector<96x256xi32>
    %104 = arith.cmpi ne, %102, %103 : vector<96x256xi32>
    %c0_i32_37 = arith.constant 0 : i32
    %105 = vector.broadcast %c0_i32_37 : i32 to vector<96x256xi32>
    %106 = arith.cmpi slt, %102, %105 : vector<96x256xi32>
    %c0_i32_38 = arith.constant 0 : i32
    %107 = arith.cmpi slt, %100, %c0_i32_38 : i32
    %108 = vector.broadcast %107 : i1 to vector<96x256xi1>
    %109 = vector.broadcast %108 : vector<96x256xi1> to vector<96x256xi1>
    %110 = arith.xori %106, %109 : vector<96x256xi1>
    %111 = arith.andi %110, %104 : vector<96x256xi1>
    %112 = vector.broadcast %100 : i32 to vector<96x256xi32>
    %113 = arith.addi %102, %112 : vector<96x256xi32>
    %114 = arith.select %111, %113, %102 : vector<96x256xi1>, vector<96x256xi32>
    %c16_i32_39 = arith.constant 16 : i32
    %c0_i32_40 = arith.constant 0 : i32
    %115 = arith.cmpi eq, %c16_i32_39, %c0_i32_40 : i32
    %c1_i32_41 = arith.constant 1 : i32
    %116 = arith.select %115, %c1_i32_41, %c16_i32_39 : i32
    %117 = vector.broadcast %116 : i32 to vector<96x256xi32>
    %118 = arith.remsi %97, %117 : vector<96x256xi32>
    %c0_i32_42 = arith.constant 0 : i32
    %119 = vector.broadcast %c0_i32_42 : i32 to vector<96x256xi32>
    %120 = arith.cmpi ne, %118, %119 : vector<96x256xi32>
    %c0_i32_43 = arith.constant 0 : i32
    %121 = vector.broadcast %c0_i32_43 : i32 to vector<96x256xi32>
    %122 = arith.cmpi slt, %118, %121 : vector<96x256xi32>
    %c0_i32_44 = arith.constant 0 : i32
    %123 = arith.cmpi slt, %116, %c0_i32_44 : i32
    %124 = vector.broadcast %123 : i1 to vector<96x256xi1>
    %125 = vector.broadcast %124 : vector<96x256xi1> to vector<96x256xi1>
    %126 = arith.xori %122, %125 : vector<96x256xi1>
    %127 = arith.andi %126, %120 : vector<96x256xi1>
    %128 = vector.broadcast %116 : i32 to vector<96x256xi32>
    %129 = arith.addi %118, %128 : vector<96x256xi32>
    %130 = arith.select %127, %129, %118 : vector<96x256xi1>, vector<96x256xi32>
    %131 = arith.cmpi eq, %114, %130 : vector<96x256xi32>
    %cst_45 = arith.constant 0.000000e+00 : f32
    %132 = vector.broadcast %cst_45 : f32 to vector<96x256xf32>
    %133 = arith.select %131, %96, %132 : vector<96x256xi1>, vector<96x256xf32>
    %c0_46 = arith.constant 0 : index
    %c0_47 = arith.constant 0 : index
    %134 = vector.load %arg8[%c0_46, %c0_47] : memref<2x32xf32, #tpu.memory_space<vmem>>, vector<2x32xf32>
    %135 = vector.extract_strided_slice %133 {offsets = [0, 0], sizes = [32, 256], strides = [1, 1]} : vector<96x256xf32> to vector<32x256xf32>
    %cst_48 = arith.constant dense<0.000000e+00> : vector<2x256xf32>
    %136 = tpu.matmul %134, %135, %cst_48 {dimension_numbers = #tpu.dot_dimension_numbers<[1], [0], [0], [1], [0, 0, 1, 1], [], []>} : vector<2x32xf32>, vector<32x256xf32>, vector<2x256xf32> -> vector<2x256xf32>
    %c0_49 = arith.constant 0 : index
    %c0_50 = arith.constant 0 : index
    %137 = vector.load %arg10[%c0_49, %c0_50] : memref<2x256xf32, #tpu.memory_space<vmem>>, vector<2x256xf32>
    tpu.vector_store %arg10[%c0_49, %c0_50], %136 {strides = array<i32>} : memref<2x256xf32, #tpu.memory_space<vmem>>, vector<2x256xf32>,
    %138 = vector.extract_strided_slice %133 {offsets = [32, 0], sizes = [32, 256], strides = [1, 1]} : vector<96x256xf32> to vector<32x256xf32>
    %cst_51 = arith.constant dense<0.000000e+00> : vector<2x256xf32>
    %139 = tpu.matmul %134, %138, %cst_51 {dimension_numbers = #tpu.dot_dimension_numbers<[1], [0], [0], [1], [0, 0, 1, 1], [], []>} : vector<2x32xf32>, vector<32x256xf32>, vector<2x256xf32> -> vector<2x256xf32>
    %c0_52 = arith.constant 0 : index
    %c0_53 = arith.constant 0 : index
    %140 = vector.load %arg11[%c0_52, %c0_53] : memref<2x256xf32, #tpu.memory_space<vmem>>, vector<2x256xf32>
    tpu.vector_store %arg11[%c0_52, %c0_53], %139 {strides = array<i32>} : memref<2x256xf32, #tpu.memory_space<vmem>>, vector<2x256xf32>,
    %141 = vector.extract_strided_slice %133 {offsets = [64, 0], sizes = [32, 256], strides = [1, 1]} : vector<96x256xf32> to vector<32x256xf32>
    %cst_54 = arith.constant dense<0.000000e+00> : vector<2x256xf32>
    %142 = tpu.matmul %134, %141, %cst_54 {dimension_numbers = #tpu.dot_dimension_numbers<[1], [0], [0], [1], [0, 0, 1, 1], [], []>} : vector<2x32xf32>, vector<32x256xf32>, vector<2x256xf32> -> vector<2x256xf32>
    %c0_55 = arith.constant 0 : index
    %c0_56 = arith.constant 0 : index
    %143 = vector.load %arg12[%c0_55, %c0_56] : memref<2x256xf32, #tpu.memory_space<vmem>>, vector<2x256xf32>
    tpu.vector_store %arg12[%c0_55, %c0_56], %142 {strides = array<i32>} : memref<2x256xf32, #tpu.memory_space<vmem>>, vector<2x256xf32>,
    return
  }
}

</mosaic_0001>

<llo_original>
// kernel: tile.0
$region0: #{tile.0}
  %s0 = inlined_call_operand.vmem [shape: bf16[9,8], index: 0, kind: input, shape index: {}]
  %s1 = inlined_call_operand.vmem [shape: bf16[1,72], index: 1, kind: output, shape index: {}]
  $region1: #{tile.0} parent=0
    #allocation0 [shape = 'u8[4096]{0}', space=vmem, size = 0x1000, scoped, tag = 'scoped mem for output reshape']
    #allocation1 [shape = 'u8[8192]{0}', space=vmem, size = 0x2000, scoped, tag = 'scoped mem for input reshape']
    %s3 = ssub.s32 256, 1
    %s4 = scalar_lea.vmem %s0, 4
    %s5 = sshrl.u32 %s3, 1
    %s6 = sor.u32 %s3, %s5
    %s7 = sand.u32 %s6, 85
    %s8 = sshrl.u32 %s7, 1
    %s9 = sor.u32 %s7, %s8
    %s10 = sand.u32 51, %s9
    %s11 = sshrl.u32 %s10, 2
    %s12 = sor.u32 %s10, %s11
    %s13 = sand.u32 15, %s12
    %v14 = vld [vmem:[%s4] sm:%s13]
    %v15 = vunpack.c.l.bf16 %v14
    %v16 = vunpack.c.h.bf16 %v14
    %s17 = scalar_lea.vmem [#allocation1], 8
    %18 = vst [vmem:[%s17] sm:%s3] %v15
    %s19 = sshrl.u32 %s3, 1
    %s20 = sor.u32 %s3, %s19
    %s21 = sand.u32 %s20, 85
    %s22 = sshrl.u32 %s21, 1
    %s23 = sor.u32 %s21, %s22
    %s24 = sand.u32 51, %s23
    %s25 = sshrl.u32 %s24, 2
    %s26 = sor.u32 %s24, %s25
    %s27 = sand.u32 15, %s26
    %v28 = vld [vmem:[%s0] sm:%s27]
    %v29 = vunpack.c.l.bf16 %v28
    %v30 = vunpack.c.h.bf16 %v28
    %31 = vst [vmem:[#allocation1] sm:%s3] %v29
    %v32 = vld [vmem:[#allocation1] sm:$0x1]
    %vm33 = vcmask 64512
    %34 = vst.msk [vmem:[#allocation0] sm:$0x1] %vm33, %v32
    %s35 = scalar_lea.vmem [#allocation1], 8
    %v36 = vld [vmem:[%s35] sm:$0x1]
    %37 = vrot.lane.b32.xlu0 %v36, 64
    %v38 = vpop.permute.xlu0 %37
    %vm39 = vcmask 589312
    %40 = vst.msk [vmem:[#allocation0] sm:$0x1] %vm39, %v38
    %s41 = scalar_lea.vmem [#allocation1], 7
    %v42 = vld [vmem:[%s41] sm:$0x1]
    %43 = vrot.lane.b32.xlu0 %v42, 56
    %v44 = vpop.permute.xlu0 %43
    %vm45 = vcmask 523712
    %46 = vst.msk [vmem:[#allocation0] sm:$0x1] %vm45, %v44
    %s47 = scalar_lea.vmem [#allocation1], 6
    %v48 = vld [vmem:[%s47] sm:$0x1]
    %49 = vrot.lane.b32.xlu0 %v48, 48
    %v50 = vpop.permute.xlu0 %49
    %vm51 = vcmask 458112
    %52 = vst.msk [vmem:[#allocation0] sm:$0x1] %vm51, %v50
    %s53 = scalar_lea.vmem [#allocation1], 5
    %v54 = vld [vmem:[%s53] sm:$0x1]
    %55 = vrot.lane.b32.xlu0 %v54, 40
    %v56 = vpop.permute.xlu0 %55
    %vm57 = vcmask 392512
    %58 = vst.msk [vmem:[#allocation0] sm:$0x1] %vm57, %v56
    %s59 = scalar_lea.vmem [#allocation1], 4
    %v60 = vld [vmem:[%s59] sm:$0x1]
    %61 = vrot.lane.b32.xlu0 %v60, 32
    %v62 = vpop.permute.xlu0 %61
    %vm63 = vcmask 326912
    %64 = vst.msk [vmem:[#allocation0] sm:$0x1] %vm63, %v62
    %s65 = scalar_lea.vmem [#allocation1], 3
    %v66 = vld [vmem:[%s65] sm:$0x1]
    %67 = vrot.lane.b32.xlu0 %v66, 24
    %v68 = vpop.permute.xlu0 %67
    %vm69 = vcmask 261312
    %70 = vst.msk [vmem:[#allocation0] sm:$0x1] %vm69, %v68
    %s71 = scalar_lea.vmem [#allocation1], 2
    %v72 = vld [vmem:[%s71] sm:$0x1]
    %73 = vrot.lane.b32.xlu0 %v72, 16
    %v74 = vpop.permute.xlu0 %73
    %vm75 = vcmask 195712
    %76 = vst.msk [vmem:[#allocation0] sm:$0x1] %vm75, %v74
    %s77 = scalar_lea.vmem [#allocation1], 1
    %v78 = vld [vmem:[%s77] sm:$0x1]
    %79 = vrot.lane.b32.xlu0 %v78, 8
    %v80 = vpop.permute.xlu0 %79
    %vm81 = vcmask 130112
    %82 = vst.msk [vmem:[#allocation0] sm:$0x1] %vm81, %v80
    %s84 = ssub.s32 4, 1
    %v85 = vld [vmem:[#allocation0] sm:%s84]
    %v86 = vpack.c.bf16 0.0, %v85
    %s88 = ssub.s32 2, 1
    %89 = vst [vmem:[%s1] sm:%s88] %v86

// kernel: encoder_forward.1
$region0: #{encoder_forward.1}
  #allocation0 [shape = 'u32[]', space=smem, size = 0x4, offset = 0x4, fixed_abs, tag = 'smem constant byte address 0x4 - core index']
  #allocation1 [shape = 'u32[72,128]{1,0:T(1,128)}', space=vmem, size = 0x9000, scoped, tag = 'internal scratch']
  %s0 = inlined_call_operand.vmem [shape: bf16[128,28], index: 0, kind: input, shape index: {}]
  %s1 = inlined_call_operand.vmem [shape: bf16[28,72], index: 1, kind: input, shape index: {}]
  %s2 = inlined_call_operand.vmem [shape: bf16[72,16], index: 2, kind: input, shape index: {}]
  %s3 = inlined_call_operand.vmem [shape: f32[128,16], index: 3, kind: input, shape index: {}]
  %s4 = inlined_call_operand.vmem [shape: f32[2,48], index: 4, kind: input, shape index: {}]
  %s5 = inlined_call_operand.vmem [shape: bf16[288,128], index: 5, kind: input, shape index: {}]
  %s6 = inlined_call_operand.vmem [shape: bf16[16,288], index: 6, kind: input, shape index: {}]
  %s7 = inlined_call_operand.vmem [shape: f32[16,256], index: 7, kind: input, shape index: {}]
  %s8 = inlined_call_operand.vmem [shape: f32[2,32], index: 8, kind: input, shape index: {}]
  %s9 = inlined_call_operand.vmem [shape: f32[32,16], index: 9, kind: input, shape index: {}]
  %s10 = inlined_call_operand.hbm [shape: f32[2,256], index: 10, kind: output, shape index: {0}]
  %s11 = inlined_call_operand.hbm [shape: f32[2,256], index: 11, kind: output, shape index: {1}]
  %s12 = inlined_call_operand.hbm [shape: f32[2,256], index: 12, kind: output, shape index: {2}]
  %13 = xla_tuple %s10, %s11, %s12
  %s14 = sld [smem:[#allocation0]]
  $region66: #{encoder_forward.1} parent=0
    _
  %s16 = ssub.s32 1, %s14
  %s17 = scalar_select 0, %s16, %s14
  $region1: #{encoder_forward.1} parent=0
    #allocation2 [shape = 'u8[2048]{0}', space=vmem, size = 0x800, scoped, tag = 'output window, operand 0, single buffered']
    #allocation3 [shape = 's32[1]{0}', space=sflag, size = 0x4, scoped, tag = 'scoped memory for encoder_forward.1']
    #allocation4 [shape = 'u8[2048]{0}', space=vmem, size = 0x800, scoped, tag = 'output window, operand 1, single buffered']
    #allocation5 [shape = 's32[1]{0}', space=sflag, size = 0x4, scoped, tag = 'scoped memory for encoder_forward.1']
    #allocation6 [shape = 'u8[2048]{0}', space=vmem, size = 0x800, scoped, tag = 'output window, operand 2, single buffered']
    %18 = vsyncpa [#allocation3], 0
    %19 = vsyncpa [#allocation5], 0
    // Predicated region
    $region2: #{encoder_forward.1} parent=1 // pred_check
      _
    $region3: #{encoder_forward.1} parent=1 // pred_check_branch
      %21 = sbr.rel (0) target = $region5
    $region4: #{encoder_forward.1} parent=1 // pred_region
      _
    $region5: #{encoder_forward.1} parent=1 // pred_fallthru
      _
    // Predicated region
    $region6: #{encoder_forward.1} parent=1 // pred_check
      _
    $region7: #{encoder_forward.1} parent=1 // pred_check_branch
      %23 = sbr.rel (0) target = $region9
    $region8: #{encoder_forward.1} parent=1 // pred_region
      _
    $region9: #{encoder_forward.1} parent=1 // pred_fallthru
      _
    // Predicated region
    $region10: #{encoder_forward.1} parent=1 // pred_check
      _
    $region11: #{encoder_forward.1} parent=1 // pred_check_branch
      %25 = sbr.rel (0) target = $region13
    $region12: #{encoder_forward.1} parent=1 // pred_region
      _
    $region13: #{encoder_forward.1} parent=1 // pred_fallthru
      _
    // Predicated region
    $region14: #{encoder_forward.1} parent=1 // pred_check
      _
    $region15: #{encoder_forward.1} parent=1 // pred_check_branch
      %27 = sbr.rel (0) target = $region17
    $region16: #{encoder_forward.1} parent=1 // pred_region
      _
    $region17: #{encoder_forward.1} parent=1 // pred_fallthru
      _
    // Predicated region
    $region18: #{encoder_forward.1} parent=1 // pred_check
      _
    $region19: #{encoder_forward.1} parent=1 // pred_check_branch
      %29 = sbr.rel (0) target = $region21
    $region20: #{encoder_forward.1} parent=1 // pred_region
      _
    $region21: #{encoder_forward.1} parent=1 // pred_fallthru
      _
    // Predicated region
    $region22: #{encoder_forward.1} parent=1 // pred_check
      _
    $region23: #{encoder_forward.1} parent=1 // pred_check_branch
      %31 = sbr.rel (0) target = $region25
    $region24: #{encoder_forward.1} parent=1 // pred_region
      _
    $region25: #{encoder_forward.1} parent=1 // pred_fallthru
      _
    // Predicated region
    $region26: #{encoder_forward.1} parent=1 // pred_check
      _
    $region27: #{encoder_forward.1} parent=1 // pred_check_branch
      %33 = sbr.rel (0) target = $region29
    $region28: #{encoder_forward.1} parent=1 // pred_region
      _
    $region29: #{encoder_forward.1} parent=1 // pred_fallthru
      _
    // Predicated region
    $region30: #{encoder_forward.1} parent=1 // pred_check
      _
    $region31: #{encoder_forward.1} parent=1 // pred_check_branch
      %35 = sbr.rel (0) target = $region33
    $region32: #{encoder_forward.1} parent=1 // pred_region
      _
    $region33: #{encoder_forward.1} parent=1 // pred_fallthru
      _
    // Predicated region
    $region34: #{encoder_forward.1} parent=1 // pred_check
      _
    $region35: #{encoder_forward.1} parent=1 // pred_check_branch
      %37 = sbr.rel (0) target = $region37
    $region36: #{encoder_forward.1} parent=1 // pred_region
      _
    $region37: #{encoder_forward.1} parent=1 // pred_fallthru
      _
    // Predicated region
    $region38: #{encoder_forward.1} parent=1 // pred_check
      _
    $region39: #{encoder_forward.1} parent=1 // pred_check_branch
      %39 = sbr.rel (0) target = $region41
    $region40: #{encoder_forward.1} parent=1 // pred_region
      _
    $region41: #{encoder_forward.1} parent=1 // pred_fallthru
      _
    %v41 = vld [vmem:[%s4] sm:$0x3]
    %v42 = vld [vmem:[%s0] sm:$0xf]
    %v43 = vld [vmem:[%s0 + $0x4] sm:$0xf]
    %v44 = vld [vmem:[%s0 + $0x8] sm:$0xf]
    %v45 = vld [vmem:[%s0 + $0xc] sm:$0xf]
    %v46 = vld [vmem:[%s0 + $0x10] sm:$0xf]
    %v47 = vld [vmem:[%s0 + $0x14] sm:$0xf]
    %v48 = vld [vmem:[%s0 + $0x18] sm:$0xf]
    %v49 = vld [vmem:[%s0 + $0x1c] sm:$0xf]
    %v50 = vld [vmem:[%s0 + $0x20] sm:$0xf]
    %v51 = vld [vmem:[%s0 + $0x24] sm:$0xf]
    %v52 = vld [vmem:[%s0 + $0x28] sm:$0xf]
    %v53 = vld [vmem:[%s0 + $0x2c] sm:$0xf]
    %v54 = vld [vmem:[%s0 + $0x30] sm:$0xf]
    %v55 = vld [vmem:[%s0 + $0x34] sm:$0xf]
    %v56 = vld [vmem:[%s0 + $0x38] sm:$0xf]
    %v57 = vld [vmem:[%s0 + $0x3c] sm:$0xf]
    %v58 = vld [vmem:[%s1] sm:$0xf]
    %v59 = vld [vmem:[%s1 + $0x4] sm:$0xf]
    %v60 = vld [vmem:[%s1 + $0x8] sm:$0xf]
    %v61 = vld [vmem:[%s1 + $0xc] sm:$0x3]
    %v78 = vunpack.c.l.b16 %v42
    %v79 = vunpack.c.l.b16 %v43
    %v80 = vunpack.c.l.b16 %v44
    %v81 = vunpack.c.l.b16 %v45
    %v82 = vunpack.c.l.b16 %v46
    %v83 = vunpack.c.l.b16 %v47
    %v84 = vunpack.c.l.b16 %v48
    %v85 = vunpack.c.l.b16 %v49
    %v86 = vunpack.c.l.b16 %v50
    %v87 = vunpack.c.l.b16 %v51
    %v88 = vunpack.c.l.b16 %v52
    %v89 = vunpack.c.l.b16 %v53
    %v90 = vunpack.c.l.b16 %v54
    %v91 = vunpack.c.l.b16 %v55
    %v92 = vunpack.c.l.b16 %v56
    %v93 = vunpack.c.l.b16 %v57
    %v94 = vpack.c.b16 %v79, %v78
    %v95 = vpack.c.b16 %v81, %v80
    %v96 = vpack.c.b16 %v83, %v82
    %v97 = vpack.c.b16 %v85, %v84
    %v98 = vpack.c.b16 %v87, %v86
    %v99 = vpack.c.b16 %v89, %v88
    %v100 = vpack.c.b16 %v91, %v90
    %v101 = vpack.c.b16 %v93, %v92
    %v106 = vunpack.c.l.b16 %v58
    %v107 = vunpack.c.l.b16 %v59
    %v108 = vunpack.c.l.b16 %v60
    %v109 = vunpack.c.l.b16 %v61
    %v110 = vpack.c.b16 %v107, %v106
    %v111 = vpack.c.b16 %v109, %v108
    %vm113 = vcmask 228352
    %v115 = vsel %vm113, %v94, 0
    %v118 = vsel %vm113, %v95, 0
    %v121 = vsel %vm113, %v96, 0
    %v124 = vsel %vm113, %v97, 0
    %v127 = vsel %vm113, %v98, 0
    %v130 = vsel %vm113, %v99, 0
    %v133 = vsel %vm113, %v100, 0
    %v136 = vsel %vm113, %v101, 0
    %vm138 = vcmask 1045504
    %v140 = vsel %vm138, %v111, 0
    %142 = vmatpush.bf16.msra.mxu0 0
    %143 = vmatpush.bf16.msra.mxu0 0
    %144 = vmatpush.bf16.msra.mxu0 0
    %145 = vmatpush.bf16.msra.mxu0 0
    %146 = vmatpush.bf16.msra.mxu0 0
    %147 = vmatpush.bf16.msra.mxu0 0
    %148 = vmatpush.bf16.msra.mxu0 %v140
    %149 = vmatpush.bf16.msra.mxu0 %v110
    %150 = vmatmul.bf16.gmra.mxu0 %v115
    %v151 = vpop.f32.mrf.mxu0
    %v152 = vadd.f32 0.0, %v151
    %v153 = vpop.f32.mrf.mxu0
    %v154 = vadd.f32 0.0, %v153
    %155 = vmatmul.bf16.gmra.mxu0 %v118
    %v156 = vpop.f32.mrf.mxu0
    %v157 = vadd.f32 0.0, %v156
    %v158 = vpop.f32.mrf.mxu0
    %v159 = vadd.f32 0.0, %v158
    %160 = vmatmul.bf16.gmra.mxu0 %v121
    %v161 = vpop.f32.mrf.mxu0
    %v162 = vadd.f32 0.0, %v161
    %v163 = vpop.f32.mrf.mxu0
    %v164 = vadd.f32 0.0, %v163
    %165 = vmatmul.bf16.gmra.mxu0 %v124
    %v166 = vpop.f32.mrf.mxu0
    %v167 = vadd.f32 0.0, %v166
    %v168 = vpop.f32.mrf.mxu0
    %v169 = vadd.f32 0.0, %v168
    %170 = vmatmul.bf16.gmra.mxu0 %v127
    %v171 = vpop.f32.mrf.mxu0
    %v172 = vadd.f32 0.0, %v171
    %v173 = vpop.f32.mrf.mxu0
    %v174 = vadd.f32 0.0, %v173
    %175 = vmatmul.bf16.gmra.mxu0 %v130
    %v176 = vpop.f32.mrf.mxu0
    %v177 = vadd.f32 0.0, %v176
    %v178 = vpop.f32.mrf.mxu0
    %v179 = vadd.f32 0.0, %v178
    %180 = vmatmul.bf16.gmra.mxu0 %v133
    %v181 = vpop.f32.mrf.mxu0
    %v182 = vadd.f32 0.0, %v181
    %v183 = vpop.f32.mrf.mxu0
    %v184 = vadd.f32 0.0, %v183
    %185 = vmatmul.bf16.gmra.mxu0 %v136
    %v186 = vpop.f32.mrf.mxu0
    %v187 = vadd.f32 0.0, %v186
    %v188 = vpop.f32.mrf.mxu0
    %v189 = vadd.f32 0.0, %v188
    %190 = vdwg.mxu0
    %v191 = vmax.f32 %v152, 0.0
    %v192 = vmax.f32 %v154, 0.0
    %v193 = vmax.f32 %v157, 0.0
    %v194 = vmax.f32 %v159, 0.0
    %v195 = vmax.f32 %v162, 0.0
    %v196 = vmax.f32 %v164, 0.0
    %v197 = vmax.f32 %v167, 0.0
    %v198 = vmax.f32 %v169, 0.0
    %v199 = vmax.f32 %v172, 0.0
    %v200 = vmax.f32 %v174, 0.0
    %v201 = vmax.f32 %v177, 0.0
    %v202 = vmax.f32 %v179, 0.0
    %v203 = vmax.f32 %v182, 0.0
    %v204 = vmax.f32 %v184, 0.0
    %v205 = vmax.f32 %v187, 0.0
    %v206 = vmax.f32 %v189, 0.0
    %v207 = vpack.c.bf16 %v192, %v191
    %v208 = vpack.c.bf16 %v194, %v193
    %v209 = vpack.c.bf16 %v196, %v195
    %v210 = vpack.c.bf16 %v198, %v197
    %v211 = vpack.c.bf16 %v200, %v199
    %v212 = vpack.c.bf16 %v202, %v201
    %v213 = vpack.c.bf16 %v204, %v203
    %v214 = vpack.c.bf16 %v206, %v205
    %v215 = vld [vmem:[%s2] sm:$0xf]
    %v216 = vld [vmem:[%s2 + $0x4] sm:$0xf]
    %v217 = vld [vmem:[%s2 + $0x8] sm:$0xf]
    %v218 = vld [vmem:[%s2 + $0xc] sm:$0xf]
    %v219 = vld [vmem:[%s2 + $0x10] sm:$0xf]
    %v220 = vld [vmem:[%s2 + $0x14] sm:$0xf]
    %v221 = vld [vmem:[%s2 + $0x18] sm:$0xf]
    %v222 = vld [vmem:[%s2 + $0x1c] sm:$0xf]
    %v223 = vld [vmem:[%s2 + $0x20] sm:$0xf]
    %v224 = vld [vmem:[%s3] sm:$0xff]
    %v225 = vld [vmem:[%s3 + $0x8] sm:$0xff]
    %v226 = vld [vmem:[%s3 + $0x10] sm:$0xff]
    %v227 = vld [vmem:[%s3 + $0x18] sm:$0xff]
    %v228 = vld [vmem:[%s3 + $0x20] sm:$0xff]
    %v229 = vld [vmem:[%s3 + $0x28] sm:$0xff]
    %v230 = vld [vmem:[%s3 + $0x30] sm:$0xff]
    %v231 = vld [vmem:[%s3 + $0x38] sm:$0xff]
    %v232 = vld [vmem:[%s3 + $0x40] sm:$0xff]
    %v233 = vld [vmem:[%s3 + $0x48] sm:$0xff]
    %v234 = vld [vmem:[%s3 + $0x50] sm:$0xff]
    %v235 = vld [vmem:[%s3 + $0x58] sm:$0xff]
    %v236 = vld [vmem:[%s3 + $0x60] sm:$0xff]
    %v237 = vld [vmem:[%s3 + $0x68] sm:$0xff]
    %v238 = vld [vmem:[%s3 + $0x70] sm:$0xff]
    %v239 = vld [vmem:[%s3 + $0x78] sm:$0xff]
    %v249 = vunpack.c.l.b16 %v215
    %v250 = vunpack.c.l.b16 %v216
    %v251 = vunpack.c.l.b16 %v217
    %v252 = vunpack.c.l.b16 %v218
    %v253 = vunpack.c.l.b16 %v219
    %v254 = vunpack.c.l.b16 %v220
    %v255 = vunpack.c.l.b16 %v221
    %v256 = vunpack.c.l.b16 %v222
    %v257 = vunpack.c.l.b16 %v223
    %v258 = vpack.c.b16 %v250, %v249
    %v259 = vpack.c.b16 %v252, %v251
    %v260 = vpack.c.b16 %v254, %v253
    %v261 = vpack.c.b16 %v256, %v255
    %v262 = vpack.c.b16 %v257, %v257
    %vm267 = vcmask 588800
    %v269 = vsel %vm267, %v207, 0
    %v272 = vsel %vm267, %v208, 0
    %v275 = vsel %vm267, %v209, 0
    %v278 = vsel %vm267, %v210, 0
    %v281 = vsel %vm267, %v211, 0
    %v284 = vsel %vm267, %v212, 0
    %v287 = vsel %vm267, %v213, 0
    %v290 = vsel %vm267, %v214, 0
    %vm292 = vcmask 1043456
    %v294 = vsel %vm292, %v262, 0
    %296 = vmatpush.bf16.msra.mxu0 0
    %297 = vmatpush.bf16.msra.mxu0 0
    %298 = vmatpush.bf16.msra.mxu0 0
    %299 = vmatpush.bf16.msra.mxu0 %v294
    %300 = vmatpush.bf16.msra.mxu0 %v261
    %301 = vmatpush.bf16.msra.mxu0 %v260
    %302 = vmatpush.bf16.msra.mxu0 %v259
    %303 = vmatpush.bf16.msra.mxu0 %v258
    %304 = vmatmul.bf16.gmra.mxu0 %v269
    %v305 = vpop.f32.mrf.mxu0
    %v306 = vadd.f32 %v224, %v305
    %v307 = vpop.f32.mrf.mxu0
    %v308 = vadd.f32 %v225, %v307
    %309 = vmatmul.bf16.gmra.mxu0 %v272
    %v310 = vpop.f32.mrf.mxu0
    %v311 = vadd.f32 %v226, %v310
    %v312 = vpop.f32.mrf.mxu0
    %v313 = vadd.f32 %v227, %v312
    %314 = vmatmul.bf16.gmra.mxu0 %v275
    %v315 = vpop.f32.mrf.mxu0
    %v316 = vadd.f32 %v228, %v315
    %v317 = vpop.f32.mrf.mxu0
    %v318 = vadd.f32 %v229, %v317
    %319 = vmatmul.bf16.gmra.mxu0 %v278
    %v320 = vpop.f32.mrf.mxu0
    %v321 = vadd.f32 %v230, %v320
    %v322 = vpop.f32.mrf.mxu0
    %v323 = vadd.f32 %v231, %v322
    %324 = vmatmul.bf16.gmra.mxu0 %v281
    %v325 = vpop.f32.mrf.mxu0
    %v326 = vadd.f32 %v232, %v325
    %v327 = vpop.f32.mrf.mxu0
    %v328 = vadd.f32 %v233, %v327
    %329 = vmatmul.bf16.gmra.mxu0 %v284
    %v330 = vpop.f32.mrf.mxu0
    %v331 = vadd.f32 %v234, %v330
    %v332 = vpop.f32.mrf.mxu0
    %v333 = vadd.f32 %v235, %v332
    %334 = vmatmul.bf16.gmra.mxu0 %v287
    %v335 = vpop.f32.mrf.mxu0
    %v336 = vadd.f32 %v236, %v335
    %v337 = vpop.f32.mrf.mxu0
    %v338 = vadd.f32 %v237, %v337
    %339 = vmatmul.bf16.gmra.mxu0 %v290
    %v340 = vpop.f32.mrf.mxu0
    %v341 = vadd.f32 %v238, %v340
    %v342 = vpop.f32.mrf.mxu0
    %v343 = vadd.f32 %v239, %v342
    %344 = vdwg.mxu0
    %vm345 = vcmask 130048
    %v346 = vsel %vm345, %v306, 0.0
    %v347 = vsel %vm345, %v308, 0.0
    %v348 = vadd.f32 %v346, %v347
    %v349 = vsel %vm345, %v311, 0.0
    %v350 = vadd.f32 %v348, %v349
    %v351 = vsel %vm345, %v313, 0.0
    %v352 = vadd.f32 %v350, %v351
    %v353 = vsel %vm345, %v316, 0.0
    %v354 = vadd.f32 %v352, %v353
    %v355 = vsel %vm345, %v318, 0.0
    %v356 = vadd.f32 %v354, %v355
    %v357 = vsel %vm345, %v321, 0.0
    %v358 = vadd.f32 %v356, %v357
    %v359 = vsel %vm345, %v323, 0.0
    %v360 = vadd.f32 %v358, %v359
    %v361 = vsel %vm345, %v326, 0.0
    %v362 = vadd.f32 %v360, %v361
    %v363 = vsel %vm345, %v328, 0.0
    %v364 = vadd.f32 %v362, %v363
    %v365 = vsel %vm345, %v331, 0.0
    %v366 = vadd.f32 %v364, %v365
    %v367 = vsel %vm345, %v333, 0.0
    %v368 = vadd.f32 %v366, %v367
    %v369 = vsel %vm345, %v336, 0.0
    %v370 = vadd.f32 %v368, %v369
    %v371 = vsel %vm345, %v338, 0.0
    %v372 = vadd.f32 %v370, %v371
    %v373 = vsel %vm345, %v341, 0.0
    %v374 = vadd.f32 %v372, %v373
    %v375 = vsel %vm345, %v343, 0.0
    %v376 = vadd.f32 %v374, %v375
    %v377 = vrot.slane %v376, 4
    %v378 = vadd.f32 %v376, %v377
    %v379 = vrot.slane %v378, 2
    %v380 = vadd.f32 %v378, %v379
    %v381 = vrot.slane %v380, 1
    %v382 = vadd.f32 %v380, %v381
    %v383 = vrcp.pop 128.0
    %v384 = vmul.f32 128.0, %v383
    %v385 = vsub.f32 1.0, %v384
    %v386 = vmul.f32 %v383, %v385
    %v387 = vadd.f32 %v383, %v386
    %vm388 = vweird.f32 %v383
    %v389 = vsel %vm388, %v383, %v387
    %v390 = vmul.f32 %v382, %v389
    %v391 = vmul.f32 %v306, %v306
    %v392 = vmul.f32 %v308, %v308
    %v393 = vmul.f32 %v311, %v311
    %v394 = vmul.f32 %v313, %v313
    %v395 = vmul.f32 %v316, %v316
    %v396 = vmul.f32 %v318, %v318
    %v397 = vmul.f32 %v321, %v321
    %v398 = vmul.f32 %v323, %v323
    %v399 = vmul.f32 %v326, %v326
    %v400 = vmul.f32 %v328, %v328
    %v401 = vmul.f32 %v331, %v331
    %v402 = vmul.f32 %v333, %v333
    %v403 = vmul.f32 %v336, %v336
    %v404 = vmul.f32 %v338, %v338
    %v405 = vmul.f32 %v341, %v341
    %v406 = vmul.f32 %v343, %v343
    %v407 = vsel %vm345, %v391, 0.0
    %v408 = vsel %vm345, %v392, 0.0
    %v409 = vadd.f32 %v407, %v408
    %v410 = vsel %vm345, %v393, 0.0
    %v411 = vadd.f32 %v409, %v410
    %v412 = vsel %vm345, %v394, 0.0
    %v413 = vadd.f32 %v411, %v412
    %v414 = vsel %vm345, %v395, 0.0
    %v415 = vadd.f32 %v413, %v414
    %v416 = vsel %vm345, %v396, 0.0
    %v417 = vadd.f32 %v415, %v416
    %v418 = vsel %vm345, %v397, 0.0
    %v419 = vadd.f32 %v417, %v418
    %v420 = vsel %vm345, %v398, 0.0
    %v421 = vadd.f32 %v419, %v420
    %v422 = vsel %vm345, %v399, 0.0
    %v423 = vadd.f32 %v421, %v422
    %v424 = vsel %vm345, %v400, 0.0
    %v425 = vadd.f32 %v423, %v424
    %v426 = vsel %vm345, %v401, 0.0
    %v427 = vadd.f32 %v425, %v426
    %v428 = vsel %vm345, %v402, 0.0
    %v429 = vadd.f32 %v427, %v428
    %v430 = vsel %vm345, %v403, 0.0
    %v431 = vadd.f32 %v429, %v430
    %v432 = vsel %vm345, %v404, 0.0
    %v433 = vadd.f32 %v431, %v432
    %v434 = vsel %vm345, %v405, 0.0
    %v435 = vadd.f32 %v433, %v434
    %v436 = vsel %vm345, %v406, 0.0
    %v437 = vadd.f32 %v435, %v436
    %v438 = vrot.slane %v437, 4
    %v439 = vadd.f32 %v437, %v438
    %v440 = vrot.slane %v439, 2
    %v441 = vadd.f32 %v439, %v440
    %v442 = vrot.slane %v441, 1
    %v443 = vadd.f32 %v441, %v442
    %v444 = vmul.f32 %v443, %v389
    %v445 = vmul.f32 %v390, %v390
    %v446 = vsub.f32 %v444, %v445
    %v447 = vmax.f32 %v446, 0.0
    %v448 = vadd.f32 %v447, 1e-05
    %v449 = vrsqrt.pop %v448
    %v450 = vmul.f32 %v449, %v448
    %v451 = vmul.f32 %v450, %v449
    %v452 = vmul.f32 0.5, %v451
    %v453 = vsub.f32 1.5, %v452
    %v454 = vmul.f32 %v449, %v453
    %vm455 = vweird.f32 %v448
    %vm456 = vweird.f32 %v449
    %vm457 = vmor %vm455, %vm456
    %v458 = vsel %vm457, %v449, %v454
    %v459 = vmul.f32 %v41, %v458
    %v460 = vmul.f32 %v390, %v459
    %v462 = vrot.slane %v460, 7
    %v464 = vsub.f32 %v41, %v462
    %v465 = vperm.slane %v459, 0
    %v466 = vmul.f32 %v306, %v465
    %v467 = vmul.f32 %v308, %v465
    %v468 = vmul.f32 %v311, %v465
    %v469 = vmul.f32 %v313, %v465
    %v470 = vmul.f32 %v316, %v465
    %v471 = vmul.f32 %v318, %v465
    %v472 = vmul.f32 %v321, %v465
    %v473 = vmul.f32 %v323, %v465
    %v474 = vmul.f32 %v326, %v465
    %v475 = vmul.f32 %v328, %v465
    %v476 = vmul.f32 %v331, %v465
    %v477 = vmul.f32 %v333, %v465
    %v478 = vmul.f32 %v336, %v465
    %v479 = vmul.f32 %v338, %v465
    %v480 = vmul.f32 %v341, %v465
    %v481 = vmul.f32 %v343, %v465
    %v482 = vperm.slane %v464, 1
    %v483 = vadd.f32 %v466, %v482
    %v484 = vadd.f32 %v467, %v482
    %v485 = vadd.f32 %v468, %v482
    %v486 = vadd.f32 %v469, %v482
    %v487 = vadd.f32 %v470, %v482
    %v488 = vadd.f32 %v471, %v482
    %v489 = vadd.f32 %v472, %v482
    %v490 = vadd.f32 %v473, %v482
    %v491 = vadd.f32 %v474, %v482
    %v492 = vadd.f32 %v475, %v482
    %v493 = vadd.f32 %v476, %v482
    %v494 = vadd.f32 %v477, %v482
    %v495 = vadd.f32 %v478, %v482
    %v496 = vadd.f32 %v479, %v482
    %v497 = vadd.f32 %v480, %v482
    %v498 = vadd.f32 %v481, %v482
    %v499 = vmax.f32 %v483, 0.0
    %v500 = vmax.f32 %v484, 0.0
    %v501 = vmax.f32 %v485, 0.0
    %v502 = vmax.f32 %v486, 0.0
    %v503 = vmax.f32 %v487, 0.0
    %v504 = vmax.f32 %v488, 0.0
    %v505 = vmax.f32 %v489, 0.0
    %v506 = vmax.f32 %v490, 0.0
    %v507 = vmax.f32 %v491, 0.0
    %v508 = vmax.f32 %v492, 0.0
    %v509 = vmax.f32 %v493, 0.0
    %v510 = vmax.f32 %v494, 0.0
    %v511 = vmax.f32 %v495, 0.0
    %v512 = vmax.f32 %v496, 0.0
    %v513 = vmax.f32 %v497, 0.0
    %v514 = vmax.f32 %v498, 0.0
    %v515 = vld [vmem:[%s5] sm:$0xf]
    %v516 = vld [vmem:[%s5 + $0x4] sm:$0xf]
    %v517 = vld [vmem:[%s5 + $0x8] sm:$0xf]
    %v518 = vld [vmem:[%s5 + $0xc] sm:$0xf]
    %v519 = vld [vmem:[%s5 + $0x10] sm:$0xf]
    %v520 = vld [vmem:[%s5 + $0x14] sm:$0xf]
    %v521 = vld [vmem:[%s5 + $0x18] sm:$0xf]
    %v522 = vld [vmem:[%s5 + $0x1c] sm:$0xf]
    %v523 = vld [vmem:[%s5 + $0x20] sm:$0xf]
    %v524 = vld [vmem:[%s5 + $0x24] sm:$0xf]
    %v525 = vld [vmem:[%s5 + $0x28] sm:$0xf]
    %v526 = vld [vmem:[%s5 + $0x2c] sm:$0xf]
    %v527 = vld [vmem:[%s5 + $0x30] sm:$0xf]
    %v528 = vld [vmem:[%s5 + $0x34] sm:$0xf]
    %v529 = vld [vmem:[%s5 + $0x38] sm:$0xf]
    %v530 = vld [vmem:[%s5 + $0x3c] sm:$0xf]
    %v531 = vld [vmem:[%s5 + $0x40] sm:$0xf]
    %v532 = vld [vmem:[%s5 + $0x44] sm:$0xf]
    %v533 = vld [vmem:[%s5 + $0x48] sm:$0xf]
    %v534 = vld [vmem:[%s5 + $0x4c] sm:$0xf]
    %v535 = vld [vmem:[%s5 + $0x50] sm:$0xf]
    %v536 = vld [vmem:[%s5 + $0x54] sm:$0xf]
    %v537 = vld [vmem:[%s5 + $0x58] sm:$0xf]
    %v538 = vld [vmem:[%s5 + $0x5c] sm:$0xf]
    %v539 = vld [vmem:[%s5 + $0x60] sm:$0xf]
    %v540 = vld [vmem:[%s5 + $0x64] sm:$0xf]
    %v541 = vld [vmem:[%s5 + $0x68] sm:$0xf]
    %v542 = vld [vmem:[%s5 + $0x6c] sm:$0xf]
    %v543 = vld [vmem:[%s5 + $0x70] sm:$0xf]
    %v544 = vld [vmem:[%s5 + $0x74] sm:$0xf]
    %v545 = vld [vmem:[%s5 + $0x78] sm:$0xf]
    %v546 = vld [vmem:[%s5 + $0x7c] sm:$0xf]
    %v547 = vld [vmem:[%s5 + $0x80] sm:$0xf]
    %v548 = vld [vmem:[%s5 + $0x84] sm:$0xf]
    %v549 = vld [vmem:[%s5 + $0x88] sm:$0xf]
    %v550 = vld [vmem:[%s5 + $0x8c] sm:$0xf]
    %v551 = vpack.c.bf16 %v500, %v499
    %v552 = vpack.c.bf16 %v502, %v501
    %v553 = vpack.c.bf16 %v504, %v503
    %v554 = vpack.c.bf16 %v506, %v505
    %v555 = vpack.c.bf16 %v508, %v507
    %v556 = vpack.c.bf16 %v510, %v509
    %v557 = vpack.c.bf16 %v512, %v511
    %v558 = vpack.c.bf16 %v514, %v513
    %v595 = vunpack.c.l.b16 %v515
    %v596 = vunpack.c.l.b16 %v516
    %v597 = vunpack.c.l.b16 %v517
    %v598 = vunpack.c.l.b16 %v518
    %v599 = vunpack.c.l.b16 %v519
    %v600 = vunpack.c.l.b16 %v520
    %v601 = vunpack.c.l.b16 %v521
    %v602 = vunpack.c.l.b16 %v522
    %v603 = vunpack.c.l.b16 %v523
    %v604 = vunpack.c.l.b16 %v524
    %v605 = vunpack.c.l.b16 %v525
    %v606 = vunpack.c.l.b16 %v526
    %v607 = vunpack.c.l.b16 %v527
    %v608 = vunpack.c.l.b16 %v528
    %v609 = vunpack.c.l.b16 %v529
    %v610 = vunpack.c.l.b16 %v530
    %v611 = vunpack.c.l.b16 %v531
    %v612 = vunpack.c.l.b16 %v532
    %v613 = vunpack.c.l.b16 %v533
    %v614 = vunpack.c.l.b16 %v534
    %v615 = vunpack.c.l.b16 %v535
    %v616 = vunpack.c.l.b16 %v536
    %v617 = vunpack.c.l.b16 %v537
    %v618 = vunpack.c.l.b16 %v538
    %v619 = vunpack.c.l.b16 %v539
    %v620 = vunpack.c.l.b16 %v540
    %v621 = vunpack.c.l.b16 %v541
    %v622 = vunpack.c.l.b16 %v542
    %v623 = vunpack.c.l.b16 %v543
    %v624 = vunpack.c.l.b16 %v544
    %v625 = vunpack.c.l.b16 %v545
    %v626 = vunpack.c.l.b16 %v546
    %v627 = vunpack.c.l.b16 %v547
    %v628 = vunpack.c.l.b16 %v548
    %v629 = vunpack.c.l.b16 %v549
    %v630 = vunpack.c.l.b16 %v550
    %v631 = vpack.c.b16 %v596, %v595
    %v632 = vpack.c.b16 %v598, %v597
    %v633 = vpack.c.b16 %v600, %v599
    %v634 = vpack.c.b16 %v602, %v601
    %v635 = vpack.c.b16 %v604, %v603
    %v636 = vpack.c.b16 %v606, %v605
    %v637 = vpack.c.b16 %v608, %v607
    %v638 = vpack.c.b16 %v610, %v609
    %v639 = vpack.c.b16 %v612, %v611
    %v640 = vpack.c.b16 %v614, %v613
    %v641 = vpack.c.b16 %v616, %v615
    %v642 = vpack.c.b16 %v618, %v617
    %v643 = vpack.c.b16 %v620, %v619
    %v644 = vpack.c.b16 %v622, %v621
    %v645 = vpack.c.b16 %v624, %v623
    %v646 = vpack.c.b16 %v626, %v625
    %v647 = vpack.c.b16 %v628, %v627
    %v648 = vpack.c.b16 %v630, %v629
    %667 = vmatpush.bf16.msra.mxu0 %v558
    %668 = vmatpush.bf16.msra.mxu0 %v557
    %669 = vmatpush.bf16.msra.mxu0 %v556
    %670 = vmatpush.bf16.msra.mxu0 %v555
    %671 = vmatpush.bf16.msra.mxu0 %v554
    %672 = vmatpush.bf16.msra.mxu0 %v553
    %673 = vmatpush.bf16.msra.mxu0 %v552
    %674 = vmatpush.bf16.msra.mxu0 %v551
    %675 = vmatmul.bf16.gmra.mxu0 %v631
    %v676 = vpop.f32.mrf.mxu0
    %v677 = vadd.f32 0.0, %v676
    %v678 = vpop.f32.mrf.mxu0
    %v679 = vadd.f32 0.0, %v678
    %680 = vmatmul.bf16.gmra.mxu0 %v632
    %v681 = vpop.f32.mrf.mxu0
    %v682 = vadd.f32 0.0, %v681
    %v683 = vpop.f32.mrf.mxu0
    %v684 = vadd.f32 0.0, %v683
    %685 = vmatmul.bf16.gmra.mxu0 %v633
    %v686 = vpop.f32.mrf.mxu0
    %v687 = vadd.f32 0.0, %v686
    %v688 = vpop.f32.mrf.mxu0
    %v689 = vadd.f32 0.0, %v688
    %690 = vmatmul.bf16.gmra.mxu0 %v634
    %v691 = vpop.f32.mrf.mxu0
    %v692 = vadd.f32 0.0, %v691
    %v693 = vpop.f32.mrf.mxu0
    %v694 = vadd.f32 0.0, %v693
    %695 = vmatmul.bf16.gmra.mxu0 %v635
    %v696 = vpop.f32.mrf.mxu0
    %v697 = vadd.f32 0.0, %v696
    %v698 = vpop.f32.mrf.mxu0
    %v699 = vadd.f32 0.0, %v698
    %700 = vmatmul.bf16.gmra.mxu0 %v636
    %v701 = vpop.f32.mrf.mxu0
    %v702 = vadd.f32 0.0, %v701
    %v703 = vpop.f32.mrf.mxu0
    %v704 = vadd.f32 0.0, %v703
    %705 = vmatmul.bf16.gmra.mxu0 %v637
    %v706 = vpop.f32.mrf.mxu0
    %v707 = vadd.f32 0.0, %v706
    %v708 = vpop.f32.mrf.mxu0
    %v709 = vadd.f32 0.0, %v708
    %710 = vmatmul.bf16.gmra.mxu0 %v638
    %v711 = vpop.f32.mrf.mxu0
    %v712 = vadd.f32 0.0, %v711
    %v713 = vpop.f32.mrf.mxu0
    %v714 = vadd.f32 0.0, %v713
    %715 = vmatmul.bf16.gmra.mxu0 %v639
    %v716 = vpop.f32.mrf.mxu0
    %v717 = vadd.f32 0.0, %v716
    %v718 = vpop.f32.mrf.mxu0
    %v719 = vadd.f32 0.0, %v718
    %720 = vmatmul.bf16.gmra.mxu0 %v640
    %v721 = vpop.f32.mrf.mxu0
    %v722 = vadd.f32 0.0, %v721
    %v723 = vpop.f32.mrf.mxu0
    %v724 = vadd.f32 0.0, %v723
    %725 = vmatmul.bf16.gmra.mxu0 %v641
    %v726 = vpop.f32.mrf.mxu0
    %v727 = vadd.f32 0.0, %v726
    %v728 = vpop.f32.mrf.mxu0
    %v729 = vadd.f32 0.0, %v728
    %730 = vmatmul.bf16.gmra.mxu0 %v642
    %v731 = vpop.f32.mrf.mxu0
    %v732 = vadd.f32 0.0, %v731
    %v733 = vpop.f32.mrf.mxu0
    %v734 = vadd.f32 0.0, %v733
    %735 = vmatmul.bf16.gmra.mxu0 %v643
    %v736 = vpop.f32.mrf.mxu0
    %v737 = vadd.f32 0.0, %v736
    %v738 = vpop.f32.mrf.mxu0
    %v739 = vadd.f32 0.0, %v738
    %740 = vmatmul.bf16.gmra.mxu0 %v644
    %v741 = vpop.f32.mrf.mxu0
    %v742 = vadd.f32 0.0, %v741
    %v743 = vpop.f32.mrf.mxu0
    %v744 = vadd.f32 0.0, %v743
    %745 = vmatmul.bf16.gmra.mxu0 %v645
    %v746 = vpop.f32.mrf.mxu0
    %v747 = vadd.f32 0.0, %v746
    %v748 = vpop.f32.mrf.mxu0
    %v749 = vadd.f32 0.0, %v748
    %750 = vmatmul.bf16.gmra.mxu0 %v646
    %v751 = vpop.f32.mrf.mxu0
    %v752 = vadd.f32 0.0, %v751
    %v753 = vpop.f32.mrf.mxu0
    %v754 = vadd.f32 0.0, %v753
    %755 = vmatmul.bf16.gmra.mxu0 %v647
    %v756 = vpop.f32.mrf.mxu0
    %v757 = vadd.f32 0.0, %v756
    %v758 = vpop.f32.mrf.mxu0
    %v759 = vadd.f32 0.0, %v758
    %760 = vmatmul.bf16.gmra.mxu0 %v648
    %v761 = vpop.f32.mrf.mxu0
    %v762 = vadd.f32 0.0, %v761
    %v763 = vpop.f32.mrf.mxu0
    %v764 = vadd.f32 0.0, %v763
    %765 = vdwg.mxu0
    %v766 = vpack.c.bf16 %v679, %v677
    %v767 = vpack.c.bf16 %v684, %v682
    %v768 = vpack.c.bf16 %v689, %v687
    %v769 = vpack.c.bf16 %v694, %v692
    %v770 = vpack.c.bf16 %v699, %v697
    %v771 = vpack.c.bf16 %v704, %v702
    %v772 = vpack.c.bf16 %v709, %v707
    %v773 = vpack.c.bf16 %v714, %v712
    %v774 = vpack.c.bf16 %v719, %v717
    %v775 = vpack.c.bf16 %v724, %v722
    %v776 = vpack.c.bf16 %v729, %v727
    %v777 = vpack.c.bf16 %v734, %v732
    %v778 = vpack.c.bf16 %v739, %v737
    %v779 = vpack.c.bf16 %v744, %v742
    %v780 = vpack.c.bf16 %v749, %v747
    %v781 = vpack.c.bf16 %v754, %v752
    %v782 = vpack.c.bf16 %v759, %v757
    %v783 = vpack.c.bf16 %v764, %v762
    %v784 = vld [vmem:[%s6] sm:$0xff]
    %v785 = vld [vmem:[%s6 + $0x8] sm:$0xf]
    %v786 = vld [vmem:[%s6 + $0xc] sm:$0xff]
    %v787 = vld [vmem:[%s6 + $0x14] sm:$0xf]
    %v792 = vunpack.c.l.b16 %v784
    %v793 = vunpack.c.h.b16 %v784
    %v794 = vunpack.c.l.b16 %v785
    %v795 = vunpack.c.l.b16 %v786
    %v796 = vunpack.c.h.b16 %v786
    %v797 = vunpack.c.l.b16 %v787
    %v798 = vpack.c.b16 %v795, %v792
    %v799 = vpack.c.b16 %v796, %v793
    %v800 = vpack.c.b16 %v797, %v794
    %v805 = vsel %vm345, %v766, 0
    %v808 = vsel %vm345, %v767, 0
    %v811 = vsel %vm345, %v768, 0
    %v814 = vsel %vm345, %v769, 0
    %v817 = vsel %vm345, %v770, 0
    %v820 = vsel %vm345, %v771, 0
    %v823 = vsel %vm345, %v772, 0
    %v826 = vsel %vm345, %v773, 0
    %v829 = vsel %vm345, %v774, 0
    %v832 = vsel %vm345, %v775, 0
    %v835 = vsel %vm345, %v776, 0
    %v838 = vsel %vm345, %v777, 0
    %v841 = vsel %vm345, %v778, 0
    %v844 = vsel %vm345, %v779, 0
    %v847 = vsel %vm345, %v780, 0
    %v850 = vsel %vm345, %v781, 0
    %v853 = vsel %vm345, %v782, 0
    %v856 = vsel %vm345, %v783, 0
    %858 = vmatpush.bf16.msra.mxu0 0
    %859 = vmatpush.bf16.msra.mxu0 0
    %860 = vmatpush.bf16.msra.mxu0 0
    %861 = vmatpush.bf16.msra.mxu0 0
    %862 = vmatpush.bf16.msra.mxu0 0
    %863 = vmatpush.bf16.msra.mxu0 0
    %864 = vmatpush.bf16.msra.mxu0 0
    %865 = vmatpush.bf16.msra.mxu0 %v798
    %866 = vmatmul.bf16.gmra.mxu0 %v805
    %v867 = vpop.f32.mrf.mxu0
    %v868 = vadd.f32 0.0, %v867
    %v869 = vpop.f32.mrf.mxu0
    %v870 = vadd.f32 0.0, %v869
    %871 = vmatmul.bf16.gmra.mxu0 %v808
    %v872 = vpop.f32.mrf.mxu0
    %v873 = vadd.f32 0.0, %v872
    %v874 = vpop.f32.mrf.mxu0
    %v875 = vadd.f32 0.0, %v874
    %876 = vmatmul.bf16.gmra.mxu0 %v811
    %v877 = vpop.f32.mrf.mxu0
    %v878 = vadd.f32 0.0, %v877
    %v879 = vpop.f32.mrf.mxu0
    %v880 = vadd.f32 0.0, %v879
    %881 = vmatmul.bf16.gmra.mxu0 %v814
    %v882 = vpop.f32.mrf.mxu0
    %v883 = vadd.f32 0.0, %v882
    %v884 = vpop.f32.mrf.mxu0
    %v885 = vadd.f32 0.0, %v884
    %886 = vmatmul.bf16.gmra.mxu0 %v817
    %v887 = vpop.f32.mrf.mxu0
    %v888 = vadd.f32 0.0, %v887
    %v889 = vpop.f32.mrf.mxu0
    %v890 = vadd.f32 0.0, %v889
    %891 = vmatmul.bf16.gmra.mxu0 %v820
    %v892 = vpop.f32.mrf.mxu0
    %v893 = vadd.f32 0.0, %v892
    %v894 = vpop.f32.mrf.mxu0
    %v895 = vadd.f32 0.0, %v894
    %896 = vmatmul.bf16.gmra.mxu0 %v823
    %v897 = vpop.f32.mrf.mxu0
    %v898 = vadd.f32 0.0, %v897
    %v899 = vpop.f32.mrf.mxu0
    %v900 = vadd.f32 0.0, %v899
    %901 = vmatmul.bf16.gmra.mxu0 %v826
    %v902 = vpop.f32.mrf.mxu0
    %v903 = vadd.f32 0.0, %v902
    %v904 = vpop.f32.mrf.mxu0
    %v905 = vadd.f32 0.0, %v904
    %906 = vmatmul.bf16.gmra.mxu0 %v829
    %v907 = vpop.f32.mrf.mxu0
    %v908 = vpop.f32.mrf.mxu0
    %909 = vmatmul.bf16.gmra.mxu0 %v832
    %v910 = vpop.f32.mrf.mxu0
    %v911 = vpop.f32.mrf.mxu0
    %912 = vmatmul.bf16.gmra.mxu0 %v835
    %v913 = vpop.f32.mrf.mxu0
    %v914 = vpop.f32.mrf.mxu0
    %915 = vmatmul.bf16.gmra.mxu0 %v838
    %v916 = vpop.f32.mrf.mxu0
    %v917 = vpop.f32.mrf.mxu0
    %918 = vmatmul.bf16.gmra.mxu0 %v841
    %v919 = vpop.f32.mrf.mxu0
    %v920 = vpop.f32.mrf.mxu0
    %921 = vmatmul.bf16.gmra.mxu0 %v844
    %v922 = vpop.f32.mrf.mxu0
    %v923 = vpop.f32.mrf.mxu0
    %924 = vmatmul.bf16.gmra.mxu0 %v847
    %v925 = vpop.f32.mrf.mxu0
    %v926 = vpop.f32.mrf.mxu0
    %927 = vmatmul.bf16.gmra.mxu0 %v850
    %v928 = vpop.f32.mrf.mxu0
    %v929 = vpop.f32.mrf.mxu0
    %930 = vmatmul.bf16.gmra.mxu0 %v853
    %v931 = vpop.f32.mrf.mxu0
    %v932 = vpop.f32.mrf.mxu0
    %933 = vmatmul.bf16.gmra.mxu0 %v856
    %v934 = vpop.f32.mrf.mxu0
    %v935 = vpop.f32.mrf.mxu0
    %936 = vdwg.mxu0
    %937 = vmatpush.bf16.msra.mxu0 0
    %938 = vmatpush.bf16.msra.mxu0 0
    %939 = vmatpush.bf16.msra.mxu0 0
    %940 = vmatpush.bf16.msra.mxu0 0
    %941 = vmatpush.bf16.msra.mxu0 0
    %942 = vmatpush.bf16.msra.mxu0 0
    %943 = vmatpush.bf16.msra.mxu0 0
    %944 = vmatpush.bf16.msra.mxu0 %v799
    %945 = vmatmul.bf16.gmra.mxu0 %v805
    %v946 = vpop.f32.mrf.mxu0
    %v947 = vpop.f32.mrf.mxu0
    %948 = vmatmul.bf16.gmra.mxu0 %v808
    %v949 = vpop.f32.mrf.mxu0
    %v950 = vpop.f32.mrf.mxu0
    %951 = vmatmul.bf16.gmra.mxu0 %v811
    %v952 = vpop.f32.mrf.mxu0
    %v953 = vpop.f32.mrf.mxu0
    %954 = vmatmul.bf16.gmra.mxu0 %v814
    %v955 = vpop.f32.mrf.mxu0
    %v956 = vpop.f32.mrf.mxu0
    %957 = vmatmul.bf16.gmra.mxu0 %v817
    %v958 = vpop.f32.mrf.mxu0
    %v959 = vpop.f32.mrf.mxu0
    %960 = vmatmul.bf16.gmra.mxu0 %v820
    %v961 = vpop.f32.mrf.mxu0
    %v962 = vpop.f32.mrf.mxu0
    %963 = vmatmul.bf16.gmra.mxu0 %v823
    %v964 = vpop.f32.mrf.mxu0
    %v965 = vpop.f32.mrf.mxu0
    %966 = vmatmul.bf16.gmra.mxu0 %v826
    %v967 = vpop.f32.mrf.mxu0
    %v968 = vpop.f32.mrf.mxu0
    %969 = vmatmul.bf16.gmra.mxu0 %v829
    %v970 = vpop.f32.mrf.mxu0
    %v971 = vadd.f32 0.0, %v970
    %v972 = vpop.f32.mrf.mxu0
    %v973 = vadd.f32 0.0, %v972
    %974 = vmatmul.bf16.gmra.mxu0 %v832
    %v975 = vpop.f32.mrf.mxu0
    %v976 = vadd.f32 0.0, %v975
    %v977 = vpop.f32.mrf.mxu0
    %v978 = vadd.f32 0.0, %v977
    %979 = vmatmul.bf16.gmra.mxu0 %v835
    %v980 = vpop.f32.mrf.mxu0
    %v981 = vadd.f32 0.0, %v980
    %v982 = vpop.f32.mrf.mxu0
    %v983 = vadd.f32 0.0, %v982
    %984 = vmatmul.bf16.gmra.mxu0 %v838
    %v985 = vpop.f32.mrf.mxu0
    %v986 = vadd.f32 0.0, %v985
    %v987 = vpop.f32.mrf.mxu0
    %v988 = vadd.f32 0.0, %v987
    %989 = vmatmul.bf16.gmra.mxu0 %v841
    %v990 = vpop.f32.mrf.mxu0
    %v991 = vadd.f32 0.0, %v990
    %v992 = vpop.f32.mrf.mxu0
    %v993 = vadd.f32 0.0, %v992
    %994 = vmatmul.bf16.gmra.mxu0 %v844
    %v995 = vpop.f32.mrf.mxu0
    %v996 = vadd.f32 0.0, %v995
    %v997 = vpop.f32.mrf.mxu0
    %v998 = vadd.f32 0.0, %v997
    %999 = vmatmul.bf16.gmra.mxu0 %v847
    %v1000 = vpop.f32.mrf.mxu0
    %v1001 = vadd.f32 0.0, %v1000
    %v1002 = vpop.f32.mrf.mxu0
    %v1003 = vadd.f32 0.0, %v1002
    %1004 = vmatmul.bf16.gmra.mxu0 %v850
    %v1005 = vpop.f32.mrf.mxu0
    %v1006 = vadd.f32 0.0, %v1005
    %v1007 = vpop.f32.mrf.mxu0
    %v1008 = vadd.f32 0.0, %v1007
    %1009 = vmatmul.bf16.gmra.mxu0 %v853
    %v1010 = vpop.f32.mrf.mxu0
    %v1011 = vpop.f32.mrf.mxu0
    %1012 = vmatmul.bf16.gmra.mxu0 %v856
    %v1013 = vpop.f32.mrf.mxu0
    %v1014 = vpop.f32.mrf.mxu0
    %1015 = vdwg.mxu0
    %1016 = vmatpush.bf16.msra.mxu0 0
    %1017 = vmatpush.bf16.msra.mxu0 0
    %1018 = vmatpush.bf16.msra.mxu0 0
    %1019 = vmatpush.bf16.msra.mxu0 0
    %1020 = vmatpush.bf16.msra.mxu0 0
    %1021 = vmatpush.bf16.msra.mxu0 0
    %1022 = vmatpush.bf16.msra.mxu0 0
    %1023 = vmatpush.bf16.msra.mxu0 %v800
    %1024 = vmatmul.bf16.gmra.mxu0 %v805
    %v1025 = vpop.f32.mrf.mxu0
    %v1026 = vpop.f32.mrf.mxu0
    %1027 = vmatmul.bf16.gmra.mxu0 %v808
    %v1028 = vpop.f32.mrf.mxu0
    %v1029 = vpop.f32.mrf.mxu0
    %1030 = vmatmul.bf16.gmra.mxu0 %v811
    %v1031 = vpop.f32.mrf.mxu0
    %v1032 = vpop.f32.mrf.mxu0
    %1033 = vmatmul.bf16.gmra.mxu0 %v814
    %v1034 = vpop.f32.mrf.mxu0
    %v1035 = vpop.f32.mrf.mxu0
    %1036 = vmatmul.bf16.gmra.mxu0 %v817
    %v1037 = vpop.f32.mrf.mxu0
    %v1038 = vpop.f32.mrf.mxu0
    %1039 = vmatmul.bf16.gmra.mxu0 %v820
    %v1040 = vpop.f32.mrf.mxu0
    %v1041 = vpop.f32.mrf.mxu0
    %1042 = vmatmul.bf16.gmra.mxu0 %v823
    %v1043 = vpop.f32.mrf.mxu0
    %v1044 = vpop.f32.mrf.mxu0
    %1045 = vmatmul.bf16.gmra.mxu0 %v826
    %v1046 = vpop.f32.mrf.mxu0
    %v1047 = vpop.f32.mrf.mxu0
    %1048 = vmatmul.bf16.gmra.mxu0 %v829
    %v1049 = vpop.f32.mrf.mxu0
    %v1050 = vpop.f32.mrf.mxu0
    %1051 = vmatmul.bf16.gmra.mxu0 %v832
    %v1052 = vpop.f32.mrf.mxu0
    %v1053 = vpop.f32.mrf.mxu0
    %1054 = vmatmul.bf16.gmra.mxu0 %v835
    %v1055 = vpop.f32.mrf.mxu0
    %v1056 = vpop.f32.mrf.mxu0
    %1057 = vmatmul.bf16.gmra.mxu0 %v838
    %v1058 = vpop.f32.mrf.mxu0
    %v1059 = vpop.f32.mrf.mxu0
    %1060 = vmatmul.bf16.gmra.mxu0 %v841
    %v1061 = vpop.f32.mrf.mxu0
    %v1062 = vpop.f32.mrf.mxu0
    %1063 = vmatmul.bf16.gmra.mxu0 %v844
    %v1064 = vpop.f32.mrf.mxu0
    %v1065 = vpop.f32.mrf.mxu0
    %1066 = vmatmul.bf16.gmra.mxu0 %v847
    %v1067 = vpop.f32.mrf.mxu0
    %v1068 = vpop.f32.mrf.mxu0
    %1069 = vmatmul.bf16.gmra.mxu0 %v850
    %v1070 = vpop.f32.mrf.mxu0
    %v1071 = vpop.f32.mrf.mxu0
    %1072 = vmatmul.bf16.gmra.mxu0 %v853
    %v1073 = vpop.f32.mrf.mxu0
    %v1074 = vadd.f32 0.0, %v1073
    %v1075 = vpop.f32.mrf.mxu0
    %v1076 = vadd.f32 0.0, %v1075
    %1077 = vmatmul.bf16.gmra.mxu0 %v856
    %v1078 = vpop.f32.mrf.mxu0
    %v1079 = vadd.f32 0.0, %v1078
    %v1080 = vpop.f32.mrf.mxu0
    %v1081 = vadd.f32 0.0, %v1080
    %1082 = vdwg.mxu0
    %1087 = vrot.lane.b32.xlu0 %v878, 96
    %v1088 = vpop.permute.xlu0 %1087
    %1089 = vrot.lane.b32.xlu0 %v880, 96
    %v1090 = vpop.permute.xlu0 %1089
    %1091 = vrot.lane.b32.xlu0 %v883, 96
    %v1092 = vpop.permute.xlu0 %1091
    %1093 = vrot.lane.b32.xlu0 %v885, 96
    %v1094 = vpop.permute.xlu0 %1093
    %v1099 = vadd.f32 %v868, %v1088
    %v1100 = vadd.f32 %v870, %v1090
    %v1101 = vadd.f32 %v873, %v1092
    %v1102 = vadd.f32 %v875, %v1094
    %1107 = vrot.lane.b32.xlu0 %v888, 64
    %v1108 = vpop.permute.xlu0 %1107
    %1109 = vrot.lane.b32.xlu0 %v890, 64
    %v1110 = vpop.permute.xlu0 %1109
    %1111 = vrot.lane.b32.xlu0 %v893, 64
    %v1112 = vpop.permute.xlu0 %1111
    %1113 = vrot.lane.b32.xlu0 %v895, 64
    %v1114 = vpop.permute.xlu0 %1113
    %v1119 = vadd.f32 %v1099, %v1108
    %v1120 = vadd.f32 %v1100, %v1110
    %v1121 = vadd.f32 %v1101, %v1112
    %v1122 = vadd.f32 %v1102, %v1114
    %1127 = vrot.lane.b32.xlu0 %v898, 32
    %v1128 = vpop.permute.xlu0 %1127
    %1129 = vrot.lane.b32.xlu0 %v900, 32
    %v1130 = vpop.permute.xlu0 %1129
    %1131 = vrot.lane.b32.xlu0 %v903, 32
    %v1132 = vpop.permute.xlu0 %1131
    %1133 = vrot.lane.b32.xlu0 %v905, 32
    %v1134 = vpop.permute.xlu0 %1133
    %v1139 = vadd.f32 %v1119, %v1128
    %v1140 = vadd.f32 %v1120, %v1130
    %v1141 = vadd.f32 %v1121, %v1132
    %v1142 = vadd.f32 %v1122, %v1134
    %v1143 = vadd.f32 %v1139, %v971
    %v1144 = vadd.f32 %v1140, %v973
    %v1145 = vadd.f32 %v1141, %v976
    %v1146 = vadd.f32 %v1142, %v978
    %1151 = vrot.lane.b32.xlu0 %v981, 96
    %v1152 = vpop.permute.xlu0 %1151
    %1153 = vrot.lane.b32.xlu0 %v983, 96
    %v1154 = vpop.permute.xlu0 %1153
    %1155 = vrot.lane.b32.xlu0 %v986, 96
    %v1156 = vpop.permute.xlu0 %1155
    %1157 = vrot.lane.b32.xlu0 %v988, 96
    %v1158 = vpop.permute.xlu0 %1157
    %v1163 = vadd.f32 %v1143, %v1152
    %v1164 = vadd.f32 %v1144, %v1154
    %v1165 = vadd.f32 %v1145, %v1156
    %v1166 = vadd.f32 %v1146, %v1158
    %1171 = vrot.lane.b32.xlu0 %v991, 64
    %v1172 = vpop.permute.xlu0 %1171
    %1173 = vrot.lane.b32.xlu0 %v993, 64
    %v1174 = vpop.permute.xlu0 %1173
    %1175 = vrot.lane.b32.xlu0 %v996, 64
    %v1176 = vpop.permute.xlu0 %1175
    %1177 = vrot.lane.b32.xlu0 %v998, 64
    %v1178 = vpop.permute.xlu0 %1177
    %v1183 = vadd.f32 %v1163, %v1172
    %v1184 = vadd.f32 %v1164, %v1174
    %v1185 = vadd.f32 %v1165, %v1176
    %v1186 = vadd.f32 %v1166, %v1178
    %1191 = vrot.lane.b32.xlu0 %v1001, 32
    %v1192 = vpop.permute.xlu0 %1191
    %1193 = vrot.lane.b32.xlu0 %v1003, 32
    %v1194 = vpop.permute.xlu0 %1193
    %1195 = vrot.lane.b32.xlu0 %v1006, 32
    %v1196 = vpop.permute.xlu0 %1195
    %1197 = vrot.lane.b32.xlu0 %v1008, 32
    %v1198 = vpop.permute.xlu0 %1197
    %v1203 = vadd.f32 %v1183, %v1192
    %v1204 = vadd.f32 %v1184, %v1194
    %v1205 = vadd.f32 %v1185, %v1196
    %v1206 = vadd.f32 %v1186, %v1198
    %v1207 = vadd.f32 %v1203, %v1074
    %v1208 = vadd.f32 %v1204, %v1076
    %v1209 = vadd.f32 %v1205, %v1079
    %v1210 = vadd.f32 %v1206, %v1081
    %vm1211 = vcmask 261120
    %v1212 = vsel %vm1211, %v1207, 0.0
    %v1213 = vsel %vm1211, %v1208, 0.0
    %v1214 = vadd.f32 %v1212, %v1213
    %v1215 = vsel %vm1211, %v1209, 0.0
    %v1216 = vadd.f32 %v1214, %v1215
    %v1217 = vsel %vm1211, %v1210, 0.0
    %v1218 = vadd.f32 %v1216, %v1217
    %v1219 = vrot.slane %v1218, 4
    %v1220 = vadd.f32 %v1218, %v1219
    %v1221 = vrot.slane %v1220, 2
    %v1222 = vadd.f32 %v1220, %v1221
    %v1223 = vrot.slane %v1222, 1
    %v1224 = vadd.f32 %v1222, %v1223
    %v1225 = vrcp.pop 32.0
    %v1226 = vmul.f32 32.0, %v1225
    %v1227 = vsub.f32 1.0, %v1226
    %v1228 = vmul.f32 %v1225, %v1227
    %v1229 = vadd.f32 %v1225, %v1228
    %vm1230 = vweird.f32 %v1225
    %v1231 = vsel %vm1230, %v1225, %v1229
    %v1232 = vmul.f32 %v1224, %v1231
    %v1233 = vmul.f32 %v1207, %v1207
    %v1234 = vmul.f32 %v1208, %v1208
    %v1235 = vmul.f32 %v1209, %v1209
    %v1236 = vmul.f32 %v1210, %v1210
    %v1237 = vsel %vm1211, %v1233, 0.0
    %v1238 = vsel %vm1211, %v1234, 0.0
    %v1239 = vadd.f32 %v1237, %v1238
    %v1240 = vsel %vm1211, %v1235, 0.0
    %v1241 = vadd.f32 %v1239, %v1240
    %v1242 = vsel %vm1211, %v1236, 0.0
    %v1243 = vadd.f32 %v1241, %v1242
    %v1244 = vrot.slane %v1243, 4
    %v1245 = vadd.f32 %v1243, %v1244
    %v1246 = vrot.slane %v1245, 2
    %v1247 = vadd.f32 %v1245, %v1246
    %v1248 = vrot.slane %v1247, 1
    %v1249 = vadd.f32 %v1247, %v1248
    %v1250 = vmul.f32 %v1249, %v1231
    %v1251 = vmul.f32 %v1232, %v1232
    %v1252 = vsub.f32 %v1250, %v1251
    %v1253 = vmax.f32 %v1252, 0.0
    %v1254 = vadd.f32 %v1253, 1e-05
    %v1255 = vrsqrt.pop %v1254
    %v1256 = vmul.f32 %v1255, %v1254
    %v1257 = vmul.f32 %v1256, %v1255
    %v1258 = vmul.f32 0.5, %v1257
    %v1259 = vsub.f32 1.5, %v1258
    %v1260 = vmul.f32 %v1255, %v1259
    %vm1261 = vweird.f32 %v1254
    %vm1262 = vweird.f32 %v1255
    %vm1263 = vmor %vm1261, %vm1262
    %v1264 = vsel %vm1263, %v1255, %v1260
    %1266 = vrot.lane.b32.xlu0 %v1264, 16
    %v1267 = vpop.permute.xlu0 %1266
    %v1269 = vmul.f32 %v41, %v1267
    %1271 = vrot.lane.b32.xlu0 %v1269, 112
    %v1272 = vpop.permute.xlu0 %1271
    %v1274 = vmul.f32 %v1232, %v1272
    %v1276 = vrot.slane %v1274, 7
    %1277 = vrot.lane.b32.xlu0 %v1276, 16
    %v1278 = vpop.permute.xlu0 %1277
    %v1280 = vsub.f32 %v41, %v1278
    %v1281 = vperm.slane %v1269, 0
    %1283 = vrot.lane.b32.xlu0 %v1281, 112
    %v1284 = vpop.permute.xlu0 %1283
    %v1286 = vmul.f32 %v1207, %v1284
    %v1287 = vmul.f32 %v1208, %v1284
    %v1288 = vmul.f32 %v1209, %v1284
    %v1289 = vmul.f32 %v1210, %v1284
    %v1290 = vperm.slane %v1280, 1
    %1292 = vrot.lane.b32.xlu0 %v1290, 112
    %v1293 = vpop.permute.xlu0 %1292
    %v1295 = vadd.f32 %v1286, %v1293
    %v1296 = vadd.f32 %v1287, %v1293
    %v1297 = vadd.f32 %v1288, %v1293
    %v1298 = vadd.f32 %v1289, %v1293
    %v1299 = vmax.f32 %v1295, 0.0
    %v1300 = vmax.f32 %v1296, 0.0
    %v1301 = vmax.f32 %v1297, 0.0
    %v1302 = vmax.f32 %v1298, 0.0
    %v1303 = vmul.f32 %v1299, 1.442695
    %v1304 = vpow.pop %v1303
    %v1305 = vmul.f32 %v1300, 1.442695
    %v1306 = vpow.pop %v1305
    %v1307 = vmul.f32 %v1301, 1.442695
    %v1308 = vpow.pop %v1307
    %v1309 = vmul.f32 %v1302, 1.442695
    %v1310 = vpow.pop %v1309
    %v1311 = vld [vmem:[%s9] sm:$0xff]
    %v1312 = vld [vmem:[%s9 + $0x8] sm:$0xff]
    %v1313 = vld [vmem:[%s9 + $0x10] sm:$0xff]
    %v1314 = vld [vmem:[%s9 + $0x18] sm:$0xff]
    %1319 = vrot.lane.b32.xlu0 %v1304, 112
    %v1320 = vpop.permute.xlu0 %1319
    %1321 = vrot.lane.b32.xlu0 %v1306, 112
    %v1322 = vpop.permute.xlu0 %1321
    %1323 = vrot.lane.b32.xlu0 %v1308, 112
    %v1324 = vpop.permute.xlu0 %1323
    %1325 = vrot.lane.b32.xlu0 %v1310, 112
    %v1326 = vpop.permute.xlu0 %1325
    %v1331 = vmul.f32 %v1311, %v1320
    %v1332 = vmul.f32 %v1312, %v1322
    %v1333 = vmul.f32 %v1313, %v1324
    %v1334 = vmul.f32 %v1314, %v1326
    %v1335 = vadd.f32 %v1299, %v1331
    %v1336 = vadd.f32 %v1300, %v1332
    %v1337 = vadd.f32 %v1301, %v1333
    %v1338 = vadd.f32 %v1302, %v1334
    %v1339 = vld [vmem:[%s7] sm:$0xff]
    %v1340 = vld [vmem:[%s7 + $0x8] sm:$0xff]
    %v1341 = vld [vmem:[%s7 + $0x10] sm:$0xff]
    %v1342 = vld [vmem:[%s7 + $0x18] sm:$0xff]
    %v1344 = vsel %vm345, %v1335, 0
    %v1347 = vsel %vm345, %v1336, 0
    %v1350 = vsel %vm345, %v1337, 0
    %v1353 = vsel %vm345, %v1338, 0
    %v1356 = vsel %vm345, %v1299, 0
    %v1359 = vsel %vm345, %v1300, 0
    %v1362 = vsel %vm345, %v1301, 0
    %v1365 = vsel %vm345, %v1302, 0
    %v1367 = vsel %vm345, %v1320, 0
    %v1369 = vsel %vm345, %v1322, 0
    %v1371 = vsel %vm345, %v1324, 0
    %v1373 = vsel %vm345, %v1326, 0
    %1375 = vmatpush.msra.mxu0 0.0
    %1376 = vmatpush.msra.mxu0 0.0
    %1377 = vmatpush.msra.mxu0 0.0
    %1378 = vmatpush.msra.mxu0 0.0
    %1379 = vmatpush.msra.mxu0 0.0
    %1380 = vmatpush.msra.mxu0 0.0
    %1381 = vmatpush.msra.mxu0 0.0
    %1382 = vmatpush.msra.mxu0 0.0
    %1383 = vmatpush.msra.mxu0 0.0
    %1384 = vmatpush.msra.mxu0 0.0
    %1385 = vmatpush.msra.mxu0 0.0
    %1386 = vmatpush.msra.mxu0 0.0
    %1387 = vmatpush.msra.mxu0 0.0
    %1388 = vmatpush.msra.mxu0 0.0
    %1389 = vmatpush.msra.mxu0 %v1341
    %1390 = vmatpush.msra.mxu0 %v1339
    %1391 = vmatmul.f32.gmra.mxu0 %v1344
    %v1392 = vpop.f32.mrf.mxu0
    %v1393 = vadd.f32 0.0, %v1392
    %1394 = vmatmul.f32.gmra.mxu0 %v1347
    %v1395 = vpop.f32.mrf.mxu0
    %v1396 = vadd.f32 0.0, %v1395
    %1397 = vmatmul.f32.gmra.mxu0 %v1350
    %v1398 = vpop.f32.mrf.mxu0
    %v1399 = vadd.f32 0.0, %v1398
    %1400 = vmatmul.f32.gmra.mxu0 %v1353
    %v1401 = vpop.f32.mrf.mxu0
    %v1402 = vadd.f32 0.0, %v1401
    %1403 = vmatmul.f32.gmra.mxu0 %v1356
    %v1404 = vpop.f32.mrf.mxu0
    %v1405 = vadd.f32 0.0, %v1404
    %1406 = vmatmul.f32.gmra.mxu0 %v1359
    %v1407 = vpop.f32.mrf.mxu0
    %v1408 = vadd.f32 0.0, %v1407
    %1409 = vmatmul.f32.gmra.mxu0 %v1362
    %v1410 = vpop.f32.mrf.mxu0
    %v1411 = vadd.f32 0.0, %v1410
    %1412 = vmatmul.f32.gmra.mxu0 %v1365
    %v1413 = vpop.f32.mrf.mxu0
    %v1414 = vadd.f32 0.0, %v1413
    %1415 = vmatmul.f32.gmra.mxu0 %v1367
    %v1416 = vpop.f32.mrf.mxu0
    %v1417 = vadd.f32 0.0, %v1416
    %1418 = vmatmul.f32.gmra.mxu0 %v1369
    %v1419 = vpop.f32.mrf.mxu0
    %v1420 = vadd.f32 0.0, %v1419
    %1421 = vmatmul.f32.gmra.mxu0 %v1371
    %v1422 = vpop.f32.mrf.mxu0
    %v1423 = vadd.f32 0.0, %v1422
    %1424 = vmatmul.f32.gmra.mxu0 %v1373
    %v1425 = vpop.f32.mrf.mxu0
    %v1426 = vadd.f32 0.0, %v1425
    %1427 = vdwg.mxu0
    %1428 = vmatpush.msra.mxu0 0.0
    %1429 = vmatpush.msra.mxu0 0.0
    %1430 = vmatpush.msra.mxu0 0.0
    %1431 = vmatpush.msra.mxu0 0.0
    %1432 = vmatpush.msra.mxu0 0.0
    %1433 = vmatpush.msra.mxu0 0.0
    %1434 = vmatpush.msra.mxu0 0.0
    %1435 = vmatpush.msra.mxu0 0.0
    %1436 = vmatpush.msra.mxu0 0.0
    %1437 = vmatpush.msra.mxu0 0.0
    %1438 = vmatpush.msra.mxu0 0.0
    %1439 = vmatpush.msra.mxu0 0.0
    %1440 = vmatpush.msra.mxu0 0.0
    %1441 = vmatpush.msra.mxu0 0.0
    %1442 = vmatpush.msra.mxu0 %v1342
    %1443 = vmatpush.msra.mxu0 %v1340
    %1444 = vmatmul.f32.gmra.mxu0 %v1344
    %v1445 = vpop.f32.mrf.mxu0
    %v1446 = vadd.f32 0.0, %v1445
    %1447 = vmatmul.f32.gmra.mxu0 %v1347
    %v1448 = vpop.f32.mrf.mxu0
    %v1449 = vadd.f32 0.0, %v1448
    %1450 = vmatmul.f32.gmra.mxu0 %v1350
    %v1451 = vpop.f32.mrf.mxu0
    %v1452 = vadd.f32 0.0, %v1451
    %1453 = vmatmul.f32.gmra.mxu0 %v1353
    %v1454 = vpop.f32.mrf.mxu0
    %v1455 = vadd.f32 0.0, %v1454
    %1456 = vmatmul.f32.gmra.mxu0 %v1356
    %v1457 = vpop.f32.mrf.mxu0
    %v1458 = vadd.f32 0.0, %v1457
    %1459 = vmatmul.f32.gmra.mxu0 %v1359
    %v1460 = vpop.f32.mrf.mxu0
    %v1461 = vadd.f32 0.0, %v1460
    %1462 = vmatmul.f32.gmra.mxu0 %v1362
    %v1463 = vpop.f32.mrf.mxu0
    %v1464 = vadd.f32 0.0, %v1463
    %1465 = vmatmul.f32.gmra.mxu0 %v1365
    %v1466 = vpop.f32.mrf.mxu0
    %v1467 = vadd.f32 0.0, %v1466
    %1468 = vmatmul.f32.gmra.mxu0 %v1367
    %v1469 = vpop.f32.mrf.mxu0
    %v1470 = vadd.f32 0.0, %v1469
    %1471 = vmatmul.f32.gmra.mxu0 %v1369
    %v1472 = vpop.f32.mrf.mxu0
    %v1473 = vadd.f32 0.0, %v1472
    %1474 = vmatmul.f32.gmra.mxu0 %v1371
    %v1475 = vpop.f32.mrf.mxu0
    %v1476 = vadd.f32 0.0, %v1475
    %1477 = vmatmul.f32.gmra.mxu0 %v1373
    %v1478 = vpop.f32.mrf.mxu0
    %v1479 = vadd.f32 0.0, %v1478
    %1480 = vdwg.mxu0
    %v1481 = vlaneseq
    %v1482 = vshrl.u32 %v1481, 7
    %v1483 = vadd.s32 %v1482, 8
    %v1484 = vadd.s32 %v1482, 16
    %v1485 = vadd.s32 %v1482, 24
    %v1486 = vadd.s32 %v1482, 32
    %v1487 = vadd.s32 %v1482, 40
    %v1488 = vadd.s32 %v1482, 48
    %v1489 = vadd.s32 %v1482, 56
    %v1490 = vadd.s32 %v1482, 64
    %v1491 = vadd.s32 %v1482, 72
    %v1492 = vadd.s32 %v1482, 80
    %v1493 = vadd.s32 %v1482, 88
    %v1494 = vlaneseq
    %v1495 = vand.u32 %v1494, 127
    %v1496 = vadd.s32 %v1495, 128
    %vm1497 = vcmp.lt.s32.totalorder %v1495, 0
    %v1498 = vsub.s32 0, %v1495
    %v1499 = vsel %vm1497, %v1498, %v1495
    %v1500 = vshrl.u32 %v1499, 4
    %v1501 = vand.u32 %v1499, 15
    %v1502 = vsub.s32 0, %v1501
    %v1503 = vsel %vm1497, %v1502, %v1501
    %vm1504 = vcmp.lt.s32.totalorder %v1496, 0
    %v1505 = vsub.s32 0, %v1496
    %v1506 = vsel %vm1504, %v1505, %v1496
    %v1507 = vshrl.u32 %v1506, 4
    %v1508 = vand.u32 %v1506, 15
    %v1509 = vsub.s32 0, %v1508
    %v1510 = vsel %vm1504, %v1509, %v1508
    %vm1511 = vcmp.ne.s32.totalorder %v1503, 0
    %vm1512 = vcmp.ne.s32.totalorder %v1510, 0
    %vm1513 = vcmp.lt.s32.totalorder %v1503, 0
    %vm1514 = vcmp.lt.s32.totalorder %v1510, 0
    %vm1515 = vmand %vm1513, %vm1511
    %vm1516 = vmand %vm1514, %vm1512
    %v1517 = vadd.s32 %v1503, 16
    %v1518 = vadd.s32 %v1510, 16
    %v1519 = vsel %vm1515, %v1517, %v1503
    %v1520 = vsel %vm1516, %v1518, %v1510
    %vm1521 = vcmp.lt.s32.totalorder %v1482, 0
    %v1522 = vsub.s32 0, %v1482
    %v1523 = vsel %vm1521, %v1522, %v1482
    %v1524 = vshrl.u32 %v1523, 4
    %v1525 = vand.u32 %v1523, 15
    %v1526 = vsub.s32 0, %v1525
    %v1527 = vsel %vm1521, %v1526, %v1525
    %vm1528 = vcmp.lt.s32.totalorder %v1483, 0
    %v1529 = vsub.s32 0, %v1483
    %v1530 = vsel %vm1528, %v1529, %v1483
    %v1531 = vshrl.u32 %v1530, 4
    %v1532 = vand.u32 %v1530, 15
    %v1533 = vsub.s32 0, %v1532
    %v1534 = vsel %vm1528, %v1533, %v1532
    %vm1535 = vcmp.lt.s32.totalorder %v1484, 0
    %v1536 = vsub.s32 0, %v1484
    %v1537 = vsel %vm1535, %v1536, %v1484
    %v1538 = vshrl.u32 %v1537, 4
    %v1539 = vand.u32 %v1537, 15
    %v1540 = vsub.s32 0, %v1539
    %v1541 = vsel %vm1535, %v1540, %v1539
    %vm1542 = vcmp.lt.s32.totalorder %v1485, 0
    %v1543 = vsub.s32 0, %v1485
    %v1544 = vsel %vm1542, %v1543, %v1485
    %v1545 = vshrl.u32 %v1544, 4
    %v1546 = vand.u32 %v1544, 15
    %v1547 = vsub.s32 0, %v1546
    %v1548 = vsel %vm1542, %v1547, %v1546
    %vm1549 = vcmp.lt.s32.totalorder %v1486, 0
    %v1550 = vsub.s32 0, %v1486
    %v1551 = vsel %vm1549, %v1550, %v1486
    %v1552 = vshrl.u32 %v1551, 4
    %v1553 = vand.u32 %v1551, 15
    %v1554 = vsub.s32 0, %v1553
    %v1555 = vsel %vm1549, %v1554, %v1553
    %vm1556 = vcmp.lt.s32.totalorder %v1487, 0
    %v1557 = vsub.s32 0, %v1487
    %v1558 = vsel %vm1556, %v1557, %v1487
    %v1559 = vshrl.u32 %v1558, 4
    %v1560 = vand.u32 %v1558, 15
    %v1561 = vsub.s32 0, %v1560
    %v1562 = vsel %vm1556, %v1561, %v1560
    %vm1563 = vcmp.lt.s32.totalorder %v1488, 0
    %v1564 = vsub.s32 0, %v1488
    %v1565 = vsel %vm1563, %v1564, %v1488
    %v1566 = vshrl.u32 %v1565, 4
    %v1567 = vand.u32 %v1565, 15
    %v1568 = vsub.s32 0, %v1567
    %v1569 = vsel %vm1563, %v1568, %v1567
    %vm1570 = vcmp.lt.s32.totalorder %v1489, 0
    %v1571 = vsub.s32 0, %v1489
    %v1572 = vsel %vm1570, %v1571, %v1489
    %v1573 = vshrl.u32 %v1572, 4
    %v1574 = vand.u32 %v1572, 15
    %v1575 = vsub.s32 0, %v1574
    %v1576 = vsel %vm1570, %v1575, %v1574
    %vm1577 = vcmp.lt.s32.totalorder %v1490, 0
    %v1578 = vsub.s32 0, %v1490
    %v1579 = vsel %vm1577, %v1578, %v1490
    %v1580 = vshrl.u32 %v1579, 4
    %v1581 = vand.u32 %v1579, 15
    %v1582 = vsub.s32 0, %v1581
    %v1583 = vsel %vm1577, %v1582, %v1581
    %vm1584 = vcmp.lt.s32.totalorder %v1491, 0
    %v1585 = vsub.s32 0, %v1491
    %v1586 = vsel %vm1584, %v1585, %v1491
    %v1587 = vshrl.u32 %v1586, 4
    %v1588 = vand.u32 %v1586, 15
    %v1589 = vsub.s32 0, %v1588
    %v1590 = vsel %vm1584, %v1589, %v1588
    %vm1591 = vcmp.lt.s32.totalorder %v1492, 0
    %v1592 = vsub.s32 0, %v1492
    %v1593 = vsel %vm1591, %v1592, %v1492
    %v1594 = vshrl.u32 %v1593, 4
    %v1595 = vand.u32 %v1593, 15
    %v1596 = vsub.s32 0, %v1595
    %v1597 = vsel %vm1591, %v1596, %v1595
    %vm1598 = vcmp.lt.s32.totalorder %v1493, 0
    %v1599 = vsub.s32 0, %v1493
    %v1600 = vsel %vm1598, %v1599, %v1493
    %v1601 = vshrl.u32 %v1600, 4
    %v1602 = vand.u32 %v1600, 15
    %v1603 = vsub.s32 0, %v1602
    %v1604 = vsel %vm1598, %v1603, %v1602
    %vm1605 = vcmp.ne.s32.totalorder %v1527, 0
    %vm1606 = vcmp.ne.s32.totalorder %v1534, 0
    %vm1607 = vcmp.ne.s32.totalorder %v1541, 0
    %vm1608 = vcmp.ne.s32.totalorder %v1548, 0
    %vm1609 = vcmp.ne.s32.totalorder %v1555, 0
    %vm1610 = vcmp.ne.s32.totalorder %v1562, 0
    %vm1611 = vcmp.ne.s32.totalorder %v1569, 0
    %vm1612 = vcmp.ne.s32.totalorder %v1576, 0
    %vm1613 = vcmp.ne.s32.totalorder %v1583, 0
    %vm1614 = vcmp.ne.s32.totalorder %v1590, 0
    %vm1615 = vcmp.ne.s32.totalorder %v1597, 0
    %vm1616 = vcmp.ne.s32.totalorder %v1604, 0
    %vm1617 = vcmp.lt.s32.totalorder %v1527, 0
    %vm1618 = vcmp.lt.s32.totalorder %v1534, 0
    %vm1619 = vcmp.lt.s32.totalorder %v1541, 0
    %vm1620 = vcmp.lt.s32.totalorder %v1548, 0
    %vm1621 = vcmp.lt.s32.totalorder %v1555, 0
    %vm1622 = vcmp.lt.s32.totalorder %v1562, 0
    %vm1623 = vcmp.lt.s32.totalorder %v1569, 0
    %vm1624 = vcmp.lt.s32.totalorder %v1576, 0
    %vm1625 = vcmp.lt.s32.totalorder %v1583, 0
    %vm1626 = vcmp.lt.s32.totalorder %v1590, 0
    %vm1627 = vcmp.lt.s32.totalorder %v1597, 0
    %vm1628 = vcmp.lt.s32.totalorder %v1604, 0
    %vm1629 = vmand %vm1617, %vm1605
    %vm1630 = vmand %vm1618, %vm1606
    %vm1631 = vmand %vm1619, %vm1607
    %vm1632 = vmand %vm1620, %vm1608
    %vm1633 = vmand %vm1621, %vm1609
    %vm1634 = vmand %vm1622, %vm1610
    %vm1635 = vmand %vm1623, %vm1611
    %vm1636 = vmand %vm1624, %vm1612
    %vm1637 = vmand %vm1625, %vm1613
    %vm1638 = vmand %vm1626, %vm1614
    %vm1639 = vmand %vm1627, %vm1615
    %vm1640 = vmand %vm1628, %vm1616
    %v1641 = vadd.s32 %v1527, 16
    %v1642 = vadd.s32 %v1534, 16
    %v1643 = vadd.s32 %v1541, 16
    %v1644 = vadd.s32 %v1548, 16
    %v1645 = vadd.s32 %v1555, 16
    %v1646 = vadd.s32 %v1562, 16
    %v1647 = vadd.s32 %v1569, 16
    %v1648 = vadd.s32 %v1576, 16
    %v1649 = vadd.s32 %v1583, 16
    %v1650 = vadd.s32 %v1590, 16
    %v1651 = vadd.s32 %v1597, 16
    %v1652 = vadd.s32 %v1604, 16
    %v1653 = vsel %vm1629, %v1641, %v1527
    %v1654 = vsel %vm1630, %v1642, %v1534
    %v1655 = vsel %vm1631, %v1643, %v1541
    %v1656 = vsel %vm1632, %v1644, %v1548
    %v1657 = vsel %vm1633, %v1645, %v1555
    %v1658 = vsel %vm1634, %v1646, %v1562
    %v1659 = vsel %vm1635, %v1647, %v1569
    %v1660 = vsel %vm1636, %v1648, %v1576
    %v1661 = vsel %vm1637, %v1649, %v1583
    %v1662 = vsel %vm1638, %v1650, %v1590
    %v1663 = vsel %vm1639, %v1651, %v1597
    %v1664 = vsel %vm1640, %v1652, %v1604
    %vm1665 = vcmp.eq.s32.totalorder %v1519, %v1653
    %vm1666 = vcmp.eq.s32.totalorder %v1520, %v1653
    %vm1667 = vcmp.eq.s32.totalorder %v1519, %v1654
    %vm1668 = vcmp.eq.s32.totalorder %v1520, %v1654
    %vm1669 = vcmp.eq.s32.totalorder %v1519, %v1655
    %vm1670 = vcmp.eq.s32.totalorder %v1520, %v1655
    %vm1671 = vcmp.eq.s32.totalorder %v1519, %v1656
    %vm1672 = vcmp.eq.s32.totalorder %v1520, %v1656
    %vm1673 = vcmp.eq.s32.totalorder %v1519, %v1657
    %vm1674 = vcmp.eq.s32.totalorder %v1520, %v1657
    %vm1675 = vcmp.eq.s32.totalorder %v1519, %v1658
    %vm1676 = vcmp.eq.s32.totalorder %v1520, %v1658
    %vm1677 = vcmp.eq.s32.totalorder %v1519, %v1659
    %vm1678 = vcmp.eq.s32.totalorder %v1520, %v1659
    %vm1679 = vcmp.eq.s32.totalorder %v1519, %v1660
    %vm1680 = vcmp.eq.s32.totalorder %v1520, %v1660
    %vm1681 = vcmp.eq.s32.totalorder %v1519, %v1661
    %vm1682 = vcmp.eq.s32.totalorder %v1520, %v1661
    %vm1683 = vcmp.eq.s32.totalorder %v1519, %v1662
    %vm1684 = vcmp.eq.s32.totalorder %v1520, %v1662
    %vm1685 = vcmp.eq.s32.totalorder %v1519, %v1663
    %vm1686 = vcmp.eq.s32.totalorder %v1520, %v1663
    %vm1687 = vcmp.eq.s32.totalorder %v1519, %v1664
    %vm1688 = vcmp.eq.s32.totalorder %v1520, %v1664
    %v1689 = vsel %vm1665, %v1393, 0.0
    %v1690 = vsel %vm1666, %v1446, 0.0
    %v1691 = vsel %vm1667, %v1396, 0.0
    %v1692 = vsel %vm1668, %v1449, 0.0
    %v1693 = vsel %vm1669, %v1399, 0.0
    %v1694 = vsel %vm1670, %v1452, 0.0
    %v1695 = vsel %vm1671, %v1402, 0.0
    %v1696 = vsel %vm1672, %v1455, 0.0
    %v1697 = vsel %vm1673, %v1405, 0.0
    %v1698 = vsel %vm1674, %v1458, 0.0
    %v1699 = vsel %vm1675, %v1408, 0.0
    %v1700 = vsel %vm1676, %v1461, 0.0
    %v1701 = vsel %vm1677, %v1411, 0.0
    %v1702 = vsel %vm1678, %v1464, 0.0
    %v1703 = vsel %vm1679, %v1414, 0.0
    %v1704 = vsel %vm1680, %v1467, 0.0
    %v1705 = vsel %vm1681, %v1417, 0.0
    %v1706 = vsel %vm1682, %v1470, 0.0
    %v1707 = vsel %vm1683, %v1420, 0.0
    %v1708 = vsel %vm1684, %v1473, 0.0
    %v1709 = vsel %vm1685, %v1423, 0.0
    %v1710 = vsel %vm1686, %v1476, 0.0
    %v1711 = vsel %vm1687, %v1426, 0.0
    %v1712 = vsel %vm1688, %v1479, 0.0
    %v1713 = vld [vmem:[%s8] sm:$0x3]
    %v1715 = vsel %vm1211, %v1713, 0
    %1717 = vmatpush.msra.mxu0 0.0
    %1718 = vmatpush.msra.mxu0 0.0
    %1719 = vmatpush.msra.mxu0 0.0
    %1720 = vmatpush.msra.mxu0 0.0
    %1721 = vmatpush.msra.mxu0 0.0
    %1722 = vmatpush.msra.mxu0 0.0
    %1723 = vmatpush.msra.mxu0 0.0
    %1724 = vmatpush.msra.mxu0 0.0
    %1725 = vmatpush.msra.mxu0 0.0
    %1726 = vmatpush.msra.mxu0 0.0
    %1727 = vmatpush.msra.mxu0 0.0
    %1728 = vmatpush.msra.mxu0 0.0
    %1729 = vmatpush.msra.mxu0 %v1695
    %1730 = vmatpush.msra.mxu0 %v1693
    %1731 = vmatpush.msra.mxu0 %v1691
    %1732 = vmatpush.msra.mxu0 %v1689
    %1733 = vmatmul.f32.gmra.mxu0 %v1715
    %v1734 = vpop.f32.mrf.mxu0
    %v1735 = vadd.f32 0.0, %v1734
    %1736 = vdwg.mxu0
    %1737 = vmatpush.msra.mxu0 0.0
    %1738 = vmatpush.msra.mxu0 0.0
    %1739 = vmatpush.msra.mxu0 0.0
    %1740 = vmatpush.msra.mxu0 0.0
    %1741 = vmatpush.msra.mxu0 0.0
    %1742 = vmatpush.msra.mxu0 0.0
    %1743 = vmatpush.msra.mxu0 0.0
    %1744 = vmatpush.msra.mxu0 0.0
    %1745 = vmatpush.msra.mxu0 0.0
    %1746 = vmatpush.msra.mxu0 0.0
    %1747 = vmatpush.msra.mxu0 0.0
    %1748 = vmatpush.msra.mxu0 0.0
    %1749 = vmatpush.msra.mxu0 %v1696
    %1750 = vmatpush.msra.mxu0 %v1694
    %1751 = vmatpush.msra.mxu0 %v1692
    %1752 = vmatpush.msra.mxu0 %v1690
    %1753 = vmatmul.f32.gmra.mxu0 %v1715
    %v1754 = vpop.f32.mrf.mxu0
    %v1755 = vadd.f32 0.0, %v1754
    %1756 = vdwg.mxu0
    %v1759 = vrot.slane %v1755, 6
    %vm1760 = vcmask 1041408
    %v1761 = vsel %vm1760, %v1735, %v1759
    %1763 = vst [vmem:[#allocation2] sm:$0xf] %v1761
    %1764 = vmatpush.msra.mxu0 0.0
    %1765 = vmatpush.msra.mxu0 0.0
    %1766 = vmatpush.msra.mxu0 0.0
    %1767 = vmatpush.msra.mxu0 0.0
    %1768 = vmatpush.msra.mxu0 0.0
    %1769 = vmatpush.msra.mxu0 0.0
    %1770 = vmatpush.msra.mxu0 0.0
    %1771 = vmatpush.msra.mxu0 0.0
    %1772 = vmatpush.msra.mxu0 0.0
    %1773 = vmatpush.msra.mxu0 0.0
    %1774 = vmatpush.msra.mxu0 0.0
    %1775 = vmatpush.msra.mxu0 0.0
    %1776 = vmatpush.msra.mxu0 %v1703
    %1777 = vmatpush.msra.mxu0 %v1701
    %1778 = vmatpush.msra.mxu0 %v1699
    %1779 = vmatpush.msra.mxu0 %v1697
    %1780 = vmatmul.f32.gmra.mxu0 %v1715
    %v1781 = vpop.f32.mrf.mxu0
    %v1782 = vadd.f32 0.0, %v1781
    %1783 = vdwg.mxu0
    %1784 = vmatpush.msra.mxu0 0.0
    %1785 = vmatpush.msra.mxu0 0.0
    %1786 = vmatpush.msra.mxu0 0.0
    %1787 = vmatpush.msra.mxu0 0.0
    %1788 = vmatpush.msra.mxu0 0.0
    %1789 = vmatpush.msra.mxu0 0.0
    %1790 = vmatpush.msra.mxu0 0.0
    %1791 = vmatpush.msra.mxu0 0.0
    %1792 = vmatpush.msra.mxu0 0.0
    %1793 = vmatpush.msra.mxu0 0.0
    %1794 = vmatpush.msra.mxu0 0.0
    %1795 = vmatpush.msra.mxu0 0.0
    %1796 = vmatpush.msra.mxu0 %v1704
    %1797 = vmatpush.msra.mxu0 %v1702
    %1798 = vmatpush.msra.mxu0 %v1700
    %1799 = vmatpush.msra.mxu0 %v1698
    %1800 = vmatmul.f32.gmra.mxu0 %v1715
    %v1801 = vpop.f32.mrf.mxu0
    %v1802 = vadd.f32 0.0, %v1801
    %1803 = vdwg.mxu0
    %v1806 = vrot.slane %v1802, 6
    %v1807 = vsel %vm1760, %v1782, %v1806
    %1809 = vst [vmem:[#allocation4] sm:$0xf] %v1807
    %1810 = vmatpush.msra.mxu0 0.0
    %1811 = vmatpush.msra.mxu0 0.0
    %1812 = vmatpush.msra.mxu0 0.0
    %1813 = vmatpush.msra.mxu0 0.0
    %1814 = vmatpush.msra.mxu0 0.0
    %1815 = vmatpush.msra.mxu0 0.0
    %1816 = vmatpush.msra.mxu0 0.0
    %1817 = vmatpush.msra.mxu0 0.0
    %1818 = vmatpush.msra.mxu0 0.0
    %1819 = vmatpush.msra.mxu0 0.0
    %1820 = vmatpush.msra.mxu0 0.0
    %1821 = vmatpush.msra.mxu0 0.0
    %1822 = vmatpush.msra.mxu0 %v1711
    %1823 = vmatpush.msra.mxu0 %v1709
    %1824 = vmatpush.msra.mxu0 %v1707
    %1825 = vmatpush.msra.mxu0 %v1705
    %1826 = vmatmul.f32.gmra.mxu0 %v1715
    %v1827 = vpop.f32.mrf.mxu0
    %v1828 = vadd.f32 0.0, %v1827
    %1829 = vdwg.mxu0
    %1830 = vmatpush.msra.mxu0 0.0
    %1831 = vmatpush.msra.mxu0 0.0
    %1832 = vmatpush.msra.mxu0 0.0
    %1833 = vmatpush.msra.mxu0 0.0
    %1834 = vmatpush.msra.mxu0 0.0
    %1835 = vmatpush.msra.mxu0 0.0
    %1836 = vmatpush.msra.mxu0 0.0
    %1837 = vmatpush.msra.mxu0 0.0
    %1838 = vmatpush.msra.mxu0 0.0
    %1839 = vmatpush.msra.mxu0 0.0
    %1840 = vmatpush.msra.mxu0 0.0
    %1841 = vmatpush.msra.mxu0 0.0
    %1842 = vmatpush.msra.mxu0 %v1712
    %1843 = vmatpush.msra.mxu0 %v1710
    %1844 = vmatpush.msra.mxu0 %v1708
    %1845 = vmatpush.msra.mxu0 %v1706
    %1846 = vmatmul.f32.gmra.mxu0 %v1715
    %v1847 = vpop.f32.mrf.mxu0
    %v1848 = vadd.f32 0.0, %v1847
    %1849 = vdwg.mxu0
    %v1852 = vrot.slane %v1848, 6
    %v1853 = vsel %vm1760, %v1828, %v1852
    %1855 = vst [vmem:[#allocation6] sm:$0xf] %v1853
    // Predicated region
    $region42: #{encoder_forward.1} parent=1 // pred_check
      _
    $region43: #{encoder_forward.1} parent=1 // pred_check_branch
      %1857 = sbr.rel (0) target = $region45
    $region44: #{encoder_forward.1} parent=1 // pred_region
      %1859 = vsyncadd [#allocation3], 0
      %s1861 = sshll.u32 [#allocation2], 4
      %s1862 = int_to_ptr.vmem [resolvable:$true] %s1861
      %s1863 = sshll.u32 %s10, 4
      %s1864 = int_to_ptr.hbm [resolvable:$true] %s1863
      %1866 = dma.vmem_to_hbm [thread:$0]  %s1862, 64, %s1864, [#allocation3]
    $region45: #{encoder_forward.1} parent=1 // pred_fallthru
      _
    // Predicated region
    $region46: #{encoder_forward.1} parent=1 // pred_check
      _
    $region47: #{encoder_forward.1} parent=1 // pred_check_branch
      %1868 = sbr.rel (0) target = $region49
    $region48: #{encoder_forward.1} parent=1 // pred_region
      %1870 = vsyncadd [#allocation5], 0
      %s1872 = sshll.u32 [#allocation4], 4
      %s1873 = int_to_ptr.vmem [resolvable:$true] %s1872
      %s1874 = sshll.u32 %s11, 4
      %s1875 = int_to_ptr.hbm [resolvable:$true] %s1874
      %1877 = dma.vmem_to_hbm [thread:$0]  %s1873, 64, %s1875, [#allocation5]
    $region49: #{encoder_forward.1} parent=1 // pred_fallthru
      _
    // Predicated region
    $region50: #{encoder_forward.1} parent=1 // pred_check
      _
    $region51: #{encoder_forward.1} parent=1 // pred_check_branch
      %1879 = sbr.rel (0) target = $region53
    $region52: #{encoder_forward.1} parent=1 // pred_region
      %1881 = vsyncadd [#allocation5], 0
      %s1883 = sshll.u32 [#allocation6], 4
      %s1884 = int_to_ptr.vmem [resolvable:$true] %s1883
      %s1885 = sshll.u32 %s12, 4
      %s1886 = int_to_ptr.hbm [resolvable:$true] %s1885
      %1888 = dma.vmem_to_hbm [thread:$0]  %s1884, 64, %s1886, [#allocation5]
    $region53: #{encoder_forward.1} parent=1 // pred_fallthru
      _
    // Predicated region
    $region54: #{encoder_forward.1} parent=1 // pred_check
      _
    $region55: #{encoder_forward.1} parent=1 // pred_check_branch
      %1890 = sbr.rel (0) target = $region57
    $region56: #{encoder_forward.1} parent=1 // pred_region
      %1892 = dma.done [#allocation3], 64
    $region57: #{encoder_forward.1} parent=1 // pred_fallthru
      _
    // Predicated region
    $region58: #{encoder_forward.1} parent=1 // pred_check
      _
    $region59: #{encoder_forward.1} parent=1 // pred_check_branch
      %1894 = sbr.rel (0) target = $region61
    $region60: #{encoder_forward.1} parent=1 // pred_region
      %1896 = dma.done [#allocation5], 64
    $region61: #{encoder_forward.1} parent=1 // pred_fallthru
      _
    // Predicated region
    $region62: #{encoder_forward.1} parent=1 // pred_check
      _
    $region63: #{encoder_forward.1} parent=1 // pred_check_branch
      %1898 = sbr.rel (0) target = $region65
    $region64: #{encoder_forward.1} parent=1 // pred_region
      %1900 = dma.done [#allocation5], 64
    $region65: #{encoder_forward.1} parent=1 // pred_fallthru
      _
    %1901 = vsyncpa [#allocation3], 1
    %1902 = vsyncpa [#allocation5], 1

</llo_original>
